<compile_context>
chip_gen: v6e
topology: v6e:2x2x1
jax: 0.10.0
libtpu: 0.0.40
codegen_flags: <defaults>
</compile_context>

<pallas_src>
import jax
import jax.numpy as jnp
from jax import lax
from jax.experimental import pallas as pl
from jax.experimental.pallas import tpu as pltpu


def _round_up(x, m):
    return ((x + m - 1) // m) * m


# ------------------------------ Pallas kernel ------------------------------ #
def _conv_s2_kernel(x_ref, w_ref, scale_ref, shift_ref, o_ref):
    # x_ref:     (n_blk, PH, PW, K2)   bf16  column-pair phase input
    # w_ref:     (2, K2, C_pad)        bf16  row-tap weight matrices
    # scale_ref: (1, C_pad)            f32   BN scale (gamma * rsqrt(var+eps))
    # shift_ref: (1, C_pad)            f32   folded conv-bias / BN shift
    # o_ref:     (n_blk*OH*PW, C_pad)  bf16  output rows (lane dense)
    n_blk, ph, pw, k2 = x_ref.shape
    oh = ph - 1
    rows_img = oh * pw

    w_top = w_ref[0]            # row tap dr = 0
    w_bot = w_ref[1]            # row tap dr = 1
    scale = scale_ref[...]
    shift = shift_ref[...]

    for img in range(n_blk):    # static unroll; n_blk kept small
        # Contiguous outer-axis windows; reshape is a free view (PW % 16 == 0).
        top = x_ref[img, 0:oh].reshape(rows_img, k2)
        bot = x_ref[img, 1:ph].reshape(rows_img, k2)
        acc = jnp.dot(top, w_top, preferred_element_type=jnp.float32)
        acc = acc + jnp.dot(bot, w_bot, preferred_element_type=jnp.float32)
        o_ref[img * rows_img:(img + 1) * rows_img, :] = (
            acc * scale + shift).astype(o_ref.dtype)


# --------------------------------- wrapper --------------------------------- #
def conv3x3_s2_bn_pallas(x_nchw, weight, conv_bias, bn_gamma, bn_beta,
                         bn_mean, bn_var, eps=1e-5,
                         vmem_budget_bytes=40 * 1024 * 1024,
                         max_rows_per_step=8192, max_images_per_step=16):
    """3x3 conv, stride 2, pad 1, + BatchNorm (inference).  x: (N, Cin, H, W)."""
    N, C, H, W = x_nchw.shape
    C_out = weight.shape[0]
    OH = (H - 1) // 2 + 1
    OW = (W - 1) // 2 + 1
    PW = _round_up(OW, 16)              # stored phase width: bf16 sublane tile
    PH = OH + 1                         # + halo row (carries the last input row)
    K2 = 8 * C                          # (py, q) column-pair phases * channels
    C_pad = _round_up(C_out, 128)       # lane-dense output columns

    # ---- column-pair space-to-depth (bf16) -----------------------------------
    x = jnp.transpose(x_nchw, (0, 2, 3, 1)).astype(jnp.bfloat16)      # NHWC
    xpad = jnp.pad(x, ((0, 0), (1, 2 * PH - 1 - H), (1, 2 * PW + 1 - W), (0, 0)))
    phases = [xpad[:, py:py + 2 * PH:2, q:q + 2 * PW:2, :]
              for py in (0, 1) for q in (0, 1, 2, 3)]
    s2d = jnp.concatenate(phases, axis=-1)                            # (N,PH,PW,8C)

    # ---- row-tap weight matrices (raw conv weights, bf16) --------------------
    wz = jnp.zeros((C, C_out), weight.dtype)
    taps = []
    for dr in (0, 1):
        blocks = []
        for py in (0, 1):
            for q in (0, 1, 2, 3):
                ky, kx = 2 * dr + py, q
                blocks.append(weight[:, :, ky, kx].T if (ky < 3 and kx < 3) else wz)
        taps.append(jnp.concatenate(blocks, axis=0))                  # (8C, Cout)
    w2 = jnp.stack(taps, axis=0)                                      # (2, 8C, Cout)
    w2 = jnp.pad(w2, ((0, 0), (0, 0), (0, C_pad - C_out))).astype(jnp.bfloat16)

    # ---- BatchNorm (inference) + conv bias as f32 scale / shift epilogue ------
    scale = bn_gamma.astype(jnp.float32) * lax.rsqrt(bn_var.astype(jnp.float32) + eps)
    shift = (conv_bias.astype(jnp.float32) - bn_mean.astype(jnp.float32)) * scale \
        + bn_beta.astype(jnp.float32)
    scale_p = jnp.pad(scale, (0, C_pad - C_out)).reshape(1, C_pad)
    shift_p = jnp.pad(shift, (0, C_pad - C_out)).reshape(1, C_pad)

    # ---- tile sizing: several images per grid step, VMEM-budgeted -------------
    rows_img = OH * PW
    in_img = PH * PW * K2 * 2                       # bf16 input per image
    out_img = rows_img * C_pad * 2                  # bf16 output per image
    w_bytes = 2 * w2.size * 2                       # double-buffered weights
    avail = max(vmem_budget_bytes - w_bytes - (1 << 20), 2 * (in_img + out_img))
    n_blk = int(avail // (2 * (in_img + out_img)))
    n_blk = max(1, min(n_blk, N, max(1, max_rows_per_step // rows_img),
                       max_images_per_step))
    # keep >= 2 grid steps when there is enough work (v7x megacore: 2 TCs)
    if N >= 4 and pl.cdiv(N, n_blk) < 2:
        n_blk = pl.cdiv(N, 2)
    N_pad = pl.cdiv(N, n_blk) * n_blk
    if N_pad > N:
        s2d = jnp.pad(s2d, ((0, N_pad - N), (0, 0), (0, 0), (0, 0)))

    out = pl.pallas_call(
        _conv_s2_kernel,
        out_shape=jax.ShapeDtypeStruct((N_pad * rows_img, C_pad), jnp.bfloat16),
        grid=(N_pad // n_blk,),
        in_specs=[
            pl.BlockSpec((n_blk, PH, PW, K2), lambda i: (i, 0, 0, 0)),
            pl.BlockSpec((2, K2, C_pad), lambda i: (0, 0, 0)),
            pl.BlockSpec((1, C_pad), lambda i: (0, 0)),
            pl.BlockSpec((1, C_pad), lambda i: (0, 0)),
        ],
        out_specs=pl.BlockSpec((n_blk * rows_img, C_pad), lambda i: (i, 0)),
        compiler_params=pltpu.CompilerParams(
            dimension_semantics=("parallel",),
            vmem_limit_bytes=48 * 1024 * 1024,   # safe on v7x (64 MiB physical)
        ),
    )(s2d, w2, scale_p, shift_p)

    out = out.reshape(N_pad, OH, PW, C_pad)[:N, :, :OW, :C_out]
    # NHWC -> NCHW for PyTorch-module output parity (drop if consumer is NHWC).
    return jnp.transpose(out, (0, 3, 1, 2))


# ---------------------------- module-level wrapper -------------------------- #
def downsample_block_forward(x_tbchw, params):
    """DownSampleBlock.forward.  x: (T, B, Cin, H, W) -> (T, B, Cout, H/2, W/2)."""
    T, B, C, H, W = x_tbchw.shape
    x_flat = x_tbchw.reshape(T * B, C, H, W)
    y = conv3x3_s2_bn_pallas(
        x_flat,
        params["conv_w"], params["conv_b"],
        params["bn_gamma"], params["bn_beta"],
        params["bn_mean"], params["bn_var"],
    )
    C_out = params["conv_w"].shape[0]
    OH, OW = y.shape[-2], y.shape[-1]
    return y.reshape(T, B, C_out, OH, OW)          # bf16 output


# --------------------------------- reference -------------------------------- #
def _reference(x_tbchw, params, eps=1e-5):
    T, B, C, H, W = x_tbchw.shape
    x = x_tbchw.reshape(T * B, C, H, W).astype(jnp.float32)
    y = lax.conv_general_dilated(
        x, params["conv_w"].astype(jnp.float32),
        window_strides=(2, 2), padding=((1, 1), (1, 1)),
        dimension_numbers=("NCHW", "OIHW", "NCHW"))
    y = y + params["conv_b"][None, :, None, None]
    scale = params["bn_gamma"] / jnp.sqrt(params["bn_var"] + eps)
    shift = params["bn_beta"] - params["bn_mean"] * scale
    y = y * scale[None, :, None, None] + shift[None, :, None, None]
    C_out = y.shape[1]
    return y.reshape(T, B, C_out, y.shape[-2], y.shape[-1])


if __name__ == "__main__":
    # Small shapes consistent with the module: T=4 (ConvBlock T), B=2,
    # dim=8 -> out_dim=16, spatial 16 -> 8 (stride-2 downsample).
    T, B, C_in, C_out, H, W = 4, 2, 8, 16, 16, 16

    key = jax.random.PRNGKey(0)
    k_x, k_w, k_b = jax.random.split(key, 3)
    x = jax.random.normal(k_x, (T, B, C_in, H, W), dtype=jnp.float32)

    params = {
        # trunc_normal_(std=0.02)-like deterministic init
        "conv_w": 0.02 * jax.random.truncated_normal(
            k_w, -2.0, 2.0, (C_out, C_in, 3, 3), dtype=jnp.float32),
        "conv_b": 0.02 * jax.random.normal(k_b, (C_out,), dtype=jnp.float32),
        # BatchNorm2d default init / running stats
        "bn_gamma": jnp.ones((C_out,), jnp.float32),
        "bn_beta": jnp.zeros((C_out,), jnp.float32),
        "bn_mean": jnp.zeros((C_out,), jnp.float32),
        "bn_var": jnp.ones((C_out,), jnp.float32),
    }

    out = downsample_block_forward(x, params)
    out = jax.block_until_ready(out)

    ref = jax.block_until_ready(_reference(x, params))
    assert out.shape == (T, B, C_out, H // 2, W // 2), out.shape
    out_f32 = out.astype(jnp.float32)
    max_err = float(jnp.max(jnp.abs(out_f32 - ref)))
    # bf16 operands and bf16 output -> modest tolerance vs pure-f32 reference
    assert jnp.allclose(out_f32, ref, atol=3e-2, rtol=3e-2), max_err

    print("KERNEL_OK")
</pallas_src>

<mosaic_0001>
module attributes {stable_mosaic.version = 11 : i64} {
  func.func @_conv_s2_kernel(%arg0: i32, %arg1: memref<4x9x16x64xbf16, #tpu.memory_space<vmem>>, %arg2: memref<2x64x128xbf16, #tpu.memory_space<vmem>>, %arg3: memref<1x128xf32, #tpu.memory_space<vmem>>, %arg4: memref<1x128xf32, #tpu.memory_space<vmem>>, %arg5: memref<512x128xbf16, #tpu.memory_space<vmem>>) attributes {dimension_semantics = [#tpu.dimension_semantics<parallel>], iteration_bounds = array<i64: 2>, scalar_prefetch = 0 : i64, scratch_operands = 0 : i64, tpu.core_type = #tpu.core_type<tc>, window_params = [{transform_indices = @transform_0, window_bounds = array<i64: 4, 9, 16, 64>}, {pipeline_mode = #tpu.pipeline_mode<synchronous>, transform_indices = @transform_1, window_bounds = array<i64: 2, 64, 128>}, {pipeline_mode = #tpu.pipeline_mode<synchronous>, transform_indices = @transform_2, window_bounds = array<i64: 1, 128>}, {pipeline_mode = #tpu.pipeline_mode<synchronous>, transform_indices = @transform_3, window_bounds = array<i64: 1, 128>}, {transform_indices = @transform_4, window_bounds = array<i64: 512, 128>}]} {
    %c0 = arith.constant 0 : index
    %c0_0 = arith.constant 0 : index
    %c0_1 = arith.constant 0 : index
    %0 = vector.load %arg2[%c0, %c0_0, %c0_1] : memref<2x64x128xbf16, #tpu.memory_space<vmem>>, vector<1x64x128xbf16>
    %1 = vector.shape_cast %0 : vector<1x64x128xbf16> to vector<64x128xbf16>
    %c1 = arith.constant 1 : index
    %c0_2 = arith.constant 0 : index
    %c0_3 = arith.constant 0 : index
    %2 = vector.load %arg2[%c1, %c0_2, %c0_3] : memref<2x64x128xbf16, #tpu.memory_space<vmem>>, vector<1x64x128xbf16>
    %3 = vector.shape_cast %2 : vector<1x64x128xbf16> to vector<64x128xbf16>
    %c0_4 = arith.constant 0 : index
    %c0_5 = arith.constant 0 : index
    %4 = vector.load %arg3[%c0_4, %c0_5] : memref<1x128xf32, #tpu.memory_space<vmem>>, vector<1x128xf32>
    %c0_6 = arith.constant 0 : index
    %c0_7 = arith.constant 0 : index
    %5 = vector.load %arg4[%c0_6, %c0_7] : memref<1x128xf32, #tpu.memory_space<vmem>>, vector<1x128xf32>
    %c0_8 = arith.constant 0 : index
    %c0_9 = arith.constant 0 : index
    %c0_10 = arith.constant 0 : index
    %c0_11 = arith.constant 0 : index
    %6 = vector.load %arg1[%c0_8, %c0_9, %c0_10, %c0_11] : memref<4x9x16x64xbf16, #tpu.memory_space<vmem>>, vector<1x8x16x64xbf16>
    %7 = vector.shape_cast %6 : vector<1x8x16x64xbf16> to vector<8x16x64xbf16>
    %8 = vector.shape_cast %7 : vector<8x16x64xbf16> to vector<128x64xbf16>
    %c0_12 = arith.constant 0 : index
    %c1_13 = arith.constant 1 : index
    %c0_14 = arith.constant 0 : index
    %c0_15 = arith.constant 0 : index
    %9 = vector.load %arg1[%c0_12, %c1_13, %c0_14, %c0_15] : memref<4x9x16x64xbf16, #tpu.memory_space<vmem>>, vector<1x8x16x64xbf16>
    %10 = vector.shape_cast %9 : vector<1x8x16x64xbf16> to vector<8x16x64xbf16>
    %11 = vector.shape_cast %10 : vector<8x16x64xbf16> to vector<128x64xbf16>
    %cst = arith.constant dense<0.000000e+00> : vector<128x128xf32>
    %12 = tpu.matmul %8, %1, %cst {dimension_numbers = #tpu.dot_dimension_numbers<[1], [0], [0], [1], [0, 0, 1, 1], [], []>} : vector<128x64xbf16>, vector<64x128xbf16>, vector<128x128xf32> -> vector<128x128xf32>
    %cst_16 = arith.constant dense<0.000000e+00> : vector<128x128xf32>
    %13 = tpu.matmul %11, %3, %cst_16 {dimension_numbers = #tpu.dot_dimension_numbers<[1], [0], [0], [1], [0, 0, 1, 1], [], []>} : vector<128x64xbf16>, vector<64x128xbf16>, vector<128x128xf32> -> vector<128x128xf32>
    %14 = arith.addf %12, %13 : vector<128x128xf32>
    %15 = vector.broadcast %4 : vector<1x128xf32> to vector<128x128xf32>
    %16 = arith.mulf %14, %15 : vector<128x128xf32>
    %17 = vector.broadcast %5 : vector<1x128xf32> to vector<128x128xf32>
    %18 = arith.addf %16, %17 : vector<128x128xf32>
    %19 = arith.truncf %18 : vector<128x128xf32> to vector<128x128xbf16>
    %c0_17 = arith.constant 0 : index
    %c0_18 = arith.constant 0 : index
    %20 = vector.load %arg5[%c0_17, %c0_18] : memref<512x128xbf16, #tpu.memory_space<vmem>>, vector<128x128xbf16>
    tpu.vector_store %arg5[%c0_17, %c0_18], %19 {strides = array<i32>} : memref<512x128xbf16, #tpu.memory_space<vmem>>, vector<128x128xbf16>,
    %c1_19 = arith.constant 1 : index
    %c0_20 = arith.constant 0 : index
    %c0_21 = arith.constant 0 : index
    %c0_22 = arith.constant 0 : index
    %21 = vector.load %arg1[%c1_19, %c0_20, %c0_21, %c0_22] : memref<4x9x16x64xbf16, #tpu.memory_space<vmem>>, vector<1x8x16x64xbf16>
    %22 = vector.shape_cast %21 : vector<1x8x16x64xbf16> to vector<8x16x64xbf16>
    %23 = vector.shape_cast %22 : vector<8x16x64xbf16> to vector<128x64xbf16>
    %c1_23 = arith.constant 1 : index
    %c1_24 = arith.constant 1 : index
    %c0_25 = arith.constant 0 : index
    %c0_26 = arith.constant 0 : index
    %24 = vector.load %arg1[%c1_23, %c1_24, %c0_25, %c0_26] : memref<4x9x16x64xbf16, #tpu.memory_space<vmem>>, vector<1x8x16x64xbf16>
    %25 = vector.shape_cast %24 : vector<1x8x16x64xbf16> to vector<8x16x64xbf16>
    %26 = vector.shape_cast %25 : vector<8x16x64xbf16> to vector<128x64xbf16>
    %cst_27 = arith.constant dense<0.000000e+00> : vector<128x128xf32>
    %27 = tpu.matmul %23, %1, %cst_27 {dimension_numbers = #tpu.dot_dimension_numbers<[1], [0], [0], [1], [0, 0, 1, 1], [], []>} : vector<128x64xbf16>, vector<64x128xbf16>, vector<128x128xf32> -> vector<128x128xf32>
    %cst_28 = arith.constant dense<0.000000e+00> : vector<128x128xf32>
    %28 = tpu.matmul %26, %3, %cst_28 {dimension_numbers = #tpu.dot_dimension_numbers<[1], [0], [0], [1], [0, 0, 1, 1], [], []>} : vector<128x64xbf16>, vector<64x128xbf16>, vector<128x128xf32> -> vector<128x128xf32>
    %29 = arith.addf %27, %28 : vector<128x128xf32>
    %30 = vector.broadcast %4 : vector<1x128xf32> to vector<128x128xf32>
    %31 = arith.mulf %29, %30 : vector<128x128xf32>
    %32 = vector.broadcast %5 : vector<1x128xf32> to vector<128x128xf32>
    %33 = arith.addf %31, %32 : vector<128x128xf32>
    %34 = arith.truncf %33 : vector<128x128xf32> to vector<128x128xbf16>
    %c128 = arith.constant 128 : index
    %c0_29 = arith.constant 0 : index
    %35 = vector.load %arg5[%c128, %c0_29] : memref<512x128xbf16, #tpu.memory_space<vmem>>, vector<128x128xbf16>
    tpu.vector_store %arg5[%c128, %c0_29], %34 {strides = array<i32>} : memref<512x128xbf16, #tpu.memory_space<vmem>>, vector<128x128xbf16>,
    %c2 = arith.constant 2 : index
    %c0_30 = arith.constant 0 : index
    %c0_31 = arith.constant 0 : index
    %c0_32 = arith.constant 0 : index
    %36 = vector.load %arg1[%c2, %c0_30, %c0_31, %c0_32] : memref<4x9x16x64xbf16, #tpu.memory_space<vmem>>, vector<1x8x16x64xbf16>
    %37 = vector.shape_cast %36 : vector<1x8x16x64xbf16> to vector<8x16x64xbf16>
    %38 = vector.shape_cast %37 : vector<8x16x64xbf16> to vector<128x64xbf16>
    %c2_33 = arith.constant 2 : index
    %c1_34 = arith.constant 1 : index
    %c0_35 = arith.constant 0 : index
    %c0_36 = arith.constant 0 : index
    %39 = vector.load %arg1[%c2_33, %c1_34, %c0_35, %c0_36] : memref<4x9x16x64xbf16, #tpu.memory_space<vmem>>, vector<1x8x16x64xbf16>
    %40 = vector.shape_cast %39 : vector<1x8x16x64xbf16> to vector<8x16x64xbf16>
    %41 = vector.shape_cast %40 : vector<8x16x64xbf16> to vector<128x64xbf16>
    %cst_37 = arith.constant dense<0.000000e+00> : vector<128x128xf32>
    %42 = tpu.matmul %38, %1, %cst_37 {dimension_numbers = #tpu.dot_dimension_numbers<[1], [0], [0], [1], [0, 0, 1, 1], [], []>} : vector<128x64xbf16>, vector<64x128xbf16>, vector<128x128xf32> -> vector<128x128xf32>
    %cst_38 = arith.constant dense<0.000000e+00> : vector<128x128xf32>
    %43 = tpu.matmul %41, %3, %cst_38 {dimension_numbers = #tpu.dot_dimension_numbers<[1], [0], [0], [1], [0, 0, 1, 1], [], []>} : vector<128x64xbf16>, vector<64x128xbf16>, vector<128x128xf32> -> vector<128x128xf32>
    %44 = arith.addf %42, %43 : vector<128x128xf32>
    %45 = vector.broadcast %4 : vector<1x128xf32> to vector<128x128xf32>
    %46 = arith.mulf %44, %45 : vector<128x128xf32>
    %47 = vector.broadcast %5 : vector<1x128xf32> to vector<128x128xf32>
    %48 = arith.addf %46, %47 : vector<128x128xf32>
    %49 = arith.truncf %48 : vector<128x128xf32> to vector<128x128xbf16>
    %c256 = arith.constant 256 : index
    %c0_39 = arith.constant 0 : index
    %50 = vector.load %arg5[%c256, %c0_39] : memref<512x128xbf16, #tpu.memory_space<vmem>>, vector<128x128xbf16>
    tpu.vector_store %arg5[%c256, %c0_39], %49 {strides = array<i32>} : memref<512x128xbf16, #tpu.memory_space<vmem>>, vector<128x128xbf16>,
    %c3 = arith.constant 3 : index
    %c0_40 = arith.constant 0 : index
    %c0_41 = arith.constant 0 : index
    %c0_42 = arith.constant 0 : index
    %51 = vector.load %arg1[%c3, %c0_40, %c0_41, %c0_42] : memref<4x9x16x64xbf16, #tpu.memory_space<vmem>>, vector<1x8x16x64xbf16>
    %52 = vector.shape_cast %51 : vector<1x8x16x64xbf16> to vector<8x16x64xbf16>
    %53 = vector.shape_cast %52 : vector<8x16x64xbf16> to vector<128x64xbf16>
    %c3_43 = arith.constant 3 : index
    %c1_44 = arith.constant 1 : index
    %c0_45 = arith.constant 0 : index
    %c0_46 = arith.constant 0 : index
    %54 = vector.load %arg1[%c3_43, %c1_44, %c0_45, %c0_46] : memref<4x9x16x64xbf16, #tpu.memory_space<vmem>>, vector<1x8x16x64xbf16>
    %55 = vector.shape_cast %54 : vector<1x8x16x64xbf16> to vector<8x16x64xbf16>
    %56 = vector.shape_cast %55 : vector<8x16x64xbf16> to vector<128x64xbf16>
    %cst_47 = arith.constant dense<0.000000e+00> : vector<128x128xf32>
    %57 = tpu.matmul %53, %1, %cst_47 {dimension_numbers = #tpu.dot_dimension_numbers<[1], [0], [0], [1], [0, 0, 1, 1], [], []>} : vector<128x64xbf16>, vector<64x128xbf16>, vector<128x128xf32> -> vector<128x128xf32>
    %cst_48 = arith.constant dense<0.000000e+00> : vector<128x128xf32>
    %58 = tpu.matmul %56, %3, %cst_48 {dimension_numbers = #tpu.dot_dimension_numbers<[1], [0], [0], [1], [0, 0, 1, 1], [], []>} : vector<128x64xbf16>, vector<64x128xbf16>, vector<128x128xf32> -> vector<128x128xf32>
    %59 = arith.addf %57, %58 : vector<128x128xf32>
    %60 = vector.broadcast %4 : vector<1x128xf32> to vector<128x128xf32>
    %61 = arith.mulf %59, %60 : vector<128x128xf32>
    %62 = vector.broadcast %5 : vector<1x128xf32> to vector<128x128xf32>
    %63 = arith.addf %61, %62 : vector<128x128xf32>
    %64 = arith.truncf %63 : vector<128x128xf32> to vector<128x128xbf16>
    %c384 = arith.constant 384 : index
    %c0_49 = arith.constant 0 : index
    %65 = vector.load %arg5[%c384, %c0_49] : memref<512x128xbf16, #tpu.memory_space<vmem>>, vector<128x128xbf16>
    tpu.vector_store %arg5[%c384, %c0_49], %64 {strides = array<i32>} : memref<512x128xbf16, #tpu.memory_space<vmem>>, vector<128x128xbf16>,
    return
  }
  func.func @transform_0(%arg0: i32) -> (i32, i32, i32, i32) {
    %c0_i32 = arith.constant 0 : i32
    %c0_i32_0 = arith.constant 0 : i32
    %c0_i32_1 = arith.constant 0 : i32
    %c0_i32_2 = arith.constant 0 : i32
    return %arg0, %c0_i32, %c0_i32_0, %c0_i32_1 : i32, i32, i32, i32
  }
  func.func @transform_1(%arg0: i32) -> (i32, i32, i32) {
    %c0_i32 = arith.constant 0 : i32
    %c0_i32_0 = arith.constant 0 : i32
    %c0_i32_1 = arith.constant 0 : i32
    %c0_i32_2 = arith.constant 0 : i32
    return %c0_i32, %c0_i32_0, %c0_i32_1 : i32, i32, i32
  }
  func.func @transform_2(%arg0: i32) -> (i32, i32) {
    %c0_i32 = arith.constant 0 : i32
    %c0_i32_0 = arith.constant 0 : i32
    %c0_i32_1 = arith.constant 0 : i32
    return %c0_i32, %c0_i32_0 : i32, i32
  }
  func.func @transform_3(%arg0: i32) -> (i32, i32) {
    %c0_i32 = arith.constant 0 : i32
    %c0_i32_0 = arith.constant 0 : i32
    %c0_i32_1 = arith.constant 0 : i32
    return %c0_i32, %c0_i32_0 : i32, i32
  }
  func.func @transform_4(%arg0: i32) -> (i32, i32) {
    %c0_i32 = arith.constant 0 : i32
    %c0_i32_0 = arith.constant 0 : i32
    return %arg0, %c0_i32 : i32, i32
  }
}

</mosaic_0001>

<llo_original>
// kernel: tpu_custom_call.1
$region0: #{tpu_custom_call.1}
  #allocation0 [shape = 'u32[]', space=smem, size = 0x4, offset = 0x4, fixed_abs, tag = 'smem constant byte address 0x4 - core index']
  #allocation1 [shape = 'u32[144,128]{1,0:T(1,128)}', space=vmem, size = 0x12000, scoped, tag = 'internal scratch']
  %s0 = inlined_call_operand.hbm [shape: bf16[8,9,16,64], index: 0, kind: input, shape index: {}]
  %s1 = inlined_call_operand.hbm [shape: bf16[2,64,128], index: 1, kind: input, shape index: {}]
  %s2 = inlined_call_operand.vmem [shape: f32[1,128], index: 2, kind: input, shape index: {}]
  %s3 = inlined_call_operand.vmem [shape: f32[1,128], index: 3, kind: input, shape index: {}]
  %s4 = inlined_call_operand.hbm [shape: bf16[1024,128], index: 4, kind: output, shape index: {}]
  %s5 = sld [smem:[#allocation0]]
  $region57: #{tpu_custom_call.1} parent=0
    _
  %s7 = ssub.s32 1, %s5
  %s8 = scalar_select 0, %s7, %s5
  $region1: #{tpu_custom_call.1} parent=0
    #allocation2 [shape = 'u8[294912]{0}', space=vmem, size = 0x48000, scoped, tag = 'input window, operand 0']
    #allocation3 [shape = 's32[2]{0}', space=sflag, size = 0x8, scoped, tag = 'scoped memory for tpu_custom_call.1']
    #allocation4 [shape = 's32[2]{0}', space=sflag, size = 0x8, scoped, tag = 'scoped memory for tpu_custom_call.1']
    #allocation5 [shape = 'u8[32768]{0}', space=vmem, size = 0x8000, scoped, tag = 'input window, operand 1, single buffered']
    #allocation6 [shape = 's32[1]{0}', space=sflag, size = 0x4, scoped, tag = 'scoped memory for tpu_custom_call.1']
    #allocation7 [shape = 'u8[262144]{0}', space=vmem, size = 0x40000, scoped, tag = 'output window, operand 0']
    %9 = vsyncpa [#allocation3], 0
    %s10 = scalar_lea.sflag [#allocation3], 1
    %11 = vsyncpa %s10, 0
    %12 = vsyncpa [#allocation6], 0
    %13 = vsyncpa [#allocation4], 0
    %s14 = scalar_lea.sflag [#allocation4], 1
    %15 = vsyncpa %s14, 0
    loop: start=0, step=1, limit=4
    $region2: #{tpu_custom_call.1} parent=1 // loop_pre_header
      _
    $region3: #{tpu_custom_call.1} parent=1 // loop_header
      %s17 = sphi 0, %s21
      %p18 = scmp.ge.s32.totalorder %s17, 4
      %s27 = sphi 0, %s29
      %s30 = sphi 0, %s27
      %s31 = sphi 0, %s30
      %s47 = sphi 0, %s31
      %s51 = sphi 0, %s51
      %s53 = sphi 0, %s51
      %s54 = sphi 0, %s53
      %s68 = sphi 0, %s54
      %s72 = sphi 0, %s72
      %s74 = sphi 0, %s72
      %s75 = sphi 0, %s74
      %s89 = sphi 0, %s75
      %s93 = sphi 0, %s93
      %s95 = sphi 0, %s93
      %s96 = sphi 0, %s95
      %s110 = sphi 0, %s96
      %s116 = sphi 0, %s118
      %s119 = sphi 0, %s116
      %s120 = sphi 0, %s119
      %s136 = sphi 0, %s120
    $region4: #{tpu_custom_call.1} parent=1 // loop_header_branch
      %20 = sbr.rel (%p18) target = $region8
    $region5: #{tpu_custom_call.1} parent=1 // loop_body
      %s22 = ssub.s32 %s17, 1
      %s23 = ssub.s32 %s17, 2
      %s24 = sadd.s32 %s17, 1
      %s25 = ssub.s32 %s17, %s24
      %p26 = scmp.eq.s32.totalorder %s25, 0
      %s28 = sadd.s32 %s27, 1
      %s29 = scalar_select %p26, %s27, %s28
      %p32 = pneg %p26
      %p33 = scmp.eq.s32.totalorder %s17, 1
      %p34 = por %p32, %p33
      %p35 = scmp.ne.s32.totalorder %s27, %s30
      %p36 = scmp.eq.s32.totalorder %s17, 0
      %p37 = por %p35, %p36
      %p38 = scmp.ne.s32.totalorder %s27, %s30
      %p39 = scmp.eq.s32.totalorder %s22, 1
      %p40 = por %p38, %p39
      %p41 = scmp.ne.s32.totalorder %s30, %s31
      %p42 = scmp.eq.s32.totalorder %s22, 0
      %p43 = por %p41, %p42
      %p44 = scmp.ne.s32.totalorder %s30, %s31
      %p45 = scmp.eq.s32.totalorder %s23, 1
      %p46 = por %p44, %p45
      %p48 = scmp.ne.s32.totalorder %s31, %s47
      %p49 = scmp.eq.s32.totalorder %s23, 0
      %p50 = por %p48, %p49
      %s52 = sadd.s32 %s51, 1
      %p55 = scmp.eq.s32.totalorder %s17, 1
      %p56 = scmp.ne.s32.totalorder %s51, %s53
      %p57 = scmp.eq.s32.totalorder %s17, 0
      %p58 = por %p56, %p57
      %p59 = scmp.ne.s32.totalorder %s51, %s53
      %p60 = scmp.eq.s32.totalorder %s22, 1
      %p61 = por %p59, %p60
      %p62 = scmp.ne.s32.totalorder %s53, %s54
      %p63 = scmp.eq.s32.totalorder %s22, 0
      %p64 = por %p62, %p63
      %p65 = scmp.ne.s32.totalorder %s53, %s54
      %p66 = scmp.eq.s32.totalorder %s23, 1
      %p67 = por %p65, %p66
      %p69 = scmp.ne.s32.totalorder %s54, %s68
      %p70 = scmp.eq.s32.totalorder %s23, 0
      %p71 = por %p69, %p70
      %s73 = sadd.s32 %s72, 1
      %p76 = scmp.eq.s32.totalorder %s17, 1
      %p77 = scmp.ne.s32.totalorder %s72, %s74
      %p78 = scmp.eq.s32.totalorder %s17, 0
      %p79 = por %p77, %p78
      %p80 = scmp.ne.s32.totalorder %s72, %s74
      %p81 = scmp.eq.s32.totalorder %s22, 1
      %p82 = por %p80, %p81
      %p83 = scmp.ne.s32.totalorder %s74, %s75
      %p84 = scmp.eq.s32.totalorder %s22, 0
      %p85 = por %p83, %p84
      %p86 = scmp.ne.s32.totalorder %s74, %s75
      %p87 = scmp.eq.s32.totalorder %s23, 1
      %p88 = por %p86, %p87
      %p90 = scmp.ne.s32.totalorder %s75, %s89
      %p91 = scmp.eq.s32.totalorder %s23, 0
      %p92 = por %p90, %p91
      %s94 = sadd.s32 %s93, 1
      %p97 = scmp.eq.s32.totalorder %s17, 1
      %p98 = scmp.ne.s32.totalorder %s93, %s95
      %p99 = scmp.eq.s32.totalorder %s17, 0
      %p100 = por %p98, %p99
      %p101 = scmp.ne.s32.totalorder %s93, %s95
      %p102 = scmp.eq.s32.totalorder %s22, 1
      %p103 = por %p101, %p102
      %p104 = scmp.ne.s32.totalorder %s95, %s96
      %p105 = scmp.eq.s32.totalorder %s22, 0
      %p106 = por %p104, %p105
      %p107 = scmp.ne.s32.totalorder %s95, %s96
      %p108 = scmp.eq.s32.totalorder %s23, 1
      %p109 = por %p107, %p108
      %p111 = scmp.ne.s32.totalorder %s96, %s110
      %p112 = scmp.eq.s32.totalorder %s23, 0
      %p113 = por %p111, %p112
      %s114 = ssub.s32 %s17, %s24
      %p115 = scmp.eq.s32.totalorder %s114, 0
      %s117 = sadd.s32 %s116, 1
      %s118 = scalar_select %p115, %s116, %s117
      %p121 = pneg %p115
      %p122 = scmp.eq.s32.totalorder %s17, 1
      %p123 = por %p121, %p122
      %p124 = scmp.ne.s32.totalorder %s116, %s119
      %p125 = scmp.eq.s32.totalorder %s17, 0
      %p126 = por %p124, %p125
      %p127 = scmp.ne.s32.totalorder %s116, %s119
      %p128 = scmp.eq.s32.totalorder %s22, 1
      %p129 = por %p127, %p128
      %p130 = scmp.ne.s32.totalorder %s119, %s120
      %p131 = scmp.eq.s32.totalorder %s22, 0
      %p132 = por %p130, %p131
      %p133 = scmp.ne.s32.totalorder %s119, %s120
      %p134 = scmp.eq.s32.totalorder %s23, 1
      %p135 = por %p133, %p134
      %p137 = scmp.ne.s32.totalorder %s120, %s136
      %p138 = scmp.eq.s32.totalorder %s23, 0
      %p139 = por %p137, %p138
      %p140 = scmp.le.s32.totalorder 1, %s17
      %p141 = scmp.lt.s32.totalorder %s17, 3
      %p142 = pnand %p140, %p141
      %p143 = pneg %p142
      // Predicated region
      $region9: #{tpu_custom_call.1} parent=5 // pred_check
        _
      $region10: #{tpu_custom_call.1} parent=5 // pred_check_branch
        %145 = sbr.rel (%p142) target = $region12
      $region11: #{tpu_custom_call.1} parent=5 // pred_region
        %s146 = ssub.s32 %s17, 1
        // Predicated region
        $region13: #{tpu_custom_call.1} parent=11 // pred_check
          %p147 = pneg %p64
        $region14: #{tpu_custom_call.1} parent=11 // pred_check_branch
          %149 = sbr.rel (%p147) target = $region16
        $region15: #{tpu_custom_call.1} parent=11 // pred_region
          %s151 = ssub.s32 1024, 1024
          %152 = vsyncadd [#allocation6], %s151
          %s153 = sshll.u32 [#allocation5], 4
          %s154 = int_to_ptr.vmem [resolvable:$true] %s153
          %159 = dma.hbm_to_vmem [thread:$0]  %s1, 1024, %s154, [#allocation6], 64, 64, 4
        $region16: #{tpu_custom_call.1} parent=11 // pred_fallthru
          _
        // Predicated region
        $region17: #{tpu_custom_call.1} parent=11 // pred_check
          %p160 = pneg %p85
        $region18: #{tpu_custom_call.1} parent=11 // pred_check_branch
          %162 = sbr.rel (%p160) target = $region20
        $region19: #{tpu_custom_call.1} parent=11 // pred_region
          _
        $region20: #{tpu_custom_call.1} parent=11 // pred_fallthru
          _
        // Predicated region
        $region21: #{tpu_custom_call.1} parent=11 // pred_check
          %p163 = pneg %p106
        $region22: #{tpu_custom_call.1} parent=11 // pred_check_branch
          %165 = sbr.rel (%p163) target = $region24
        $region23: #{tpu_custom_call.1} parent=11 // pred_region
          _
        $region24: #{tpu_custom_call.1} parent=11 // pred_fallthru
          _
      $region12: #{tpu_custom_call.1} parent=5 // pred_fallthru
        _
      %p166 = scmp.lt.s32.totalorder %s17, 2
      // Predicated region
      $region25: #{tpu_custom_call.1} parent=5 // pred_check
        %p167 = pneg %p166
      $region26: #{tpu_custom_call.1} parent=5 // pred_check_branch
        %169 = sbr.rel (%p167) target = $region28
      $region27: #{tpu_custom_call.1} parent=5 // pred_region
        // Predicated region
        $region29: #{tpu_custom_call.1} parent=27 // pred_check
          %p170 = pneg %p37
        $region30: #{tpu_custom_call.1} parent=27 // pred_check_branch
          %172 = sbr.rel (%p170) target = $region32
        $region31: #{tpu_custom_call.1} parent=27 // pred_region
          %s173 = sand.u32 %s27, 1
          %s174 = scalar_lea.sflag [#allocation3], %s173
          %s175 = sand.u32 %s27, 1
          %s176 = smul.addr %s175, 288
          %s177 = scalar_lea.vmem [#allocation2], %s176
          %s178 = smul.u32 4, %s17
          %s180 = ssub.s32 4608, 4608
          %181 = vsyncadd %s174, %s180
          %s182 = smul.addr %s178, 18
          %s183 = smul.addr %s182, 64
          %s184 = scalar_lea.hbm %s0, %s183
          %s185 = sshll.u32 %s177, 4
          %s186 = int_to_ptr.vmem [resolvable:$true] %s185
          %191 = dma.hbm_to_vmem [thread:$0]  %s184, 4608, %s186, %s174, 64, 64, 4
        $region32: #{tpu_custom_call.1} parent=27 // pred_fallthru
          _
      $region28: #{tpu_custom_call.1} parent=5 // pred_fallthru
        _
      %p192 = scmp.le.s32.totalorder 1, %s17
      %p193 = scmp.lt.s32.totalorder %s17, 3
      %p194 = pnand %p192, %p193
      %p195 = pneg %p194
      // Predicated region
      $region33: #{tpu_custom_call.1} parent=5 // pred_check
        _
      $region34: #{tpu_custom_call.1} parent=5 // pred_check_branch
        %197 = sbr.rel (%p194) target = $region36
      $region35: #{tpu_custom_call.1} parent=5 // pred_region
        %s198 = ssub.s32 %s17, 1
        %s199 = sand.u32 %s30, 1
        %s200 = scalar_lea.sflag [#allocation3], %s199
        %s201 = sand.u32 %s30, 1
        %s202 = smul.addr %s201, 288
        %s203 = scalar_lea.vmem [#allocation2], %s202
        // Predicated region
        $region37: #{tpu_custom_call.1} parent=35 // pred_check
          %p204 = pneg %p43
        $region38: #{tpu_custom_call.1} parent=35 // pred_check_branch
          %206 = sbr.rel (%p204) target = $region40
        $region39: #{tpu_custom_call.1} parent=35 // pred_region
          %207 = dma.done %s200, 4608
        $region40: #{tpu_custom_call.1} parent=35 // pred_fallthru
          _
        // Predicated region
        $region41: #{tpu_custom_call.1} parent=35 // pred_check
          %p208 = pneg %p64
        $region42: #{tpu_custom_call.1} parent=35 // pred_check_branch
          %210 = sbr.rel (%p208) target = $region44
        $region43: #{tpu_custom_call.1} parent=35 // pred_region
          %211 = dma.done [#allocation6], 1024
        $region44: #{tpu_custom_call.1} parent=35 // pred_fallthru
          _
        %s212 = sand.u32 %s30, 1
        %s213 = scalar_lea.sflag [#allocation3], %s212
        %s214 = sand.u32 %s30, 1
        %s215 = smul.addr %s214, 288
        %s216 = scalar_lea.vmem [#allocation2], %s215
        %p217 = pneg %p43
        %p218 = pneg %p40
        %p219 = pneg %p64
        %p220 = pneg %p61
        %p221 = pneg %p85
        %p222 = pneg %p82
        %p223 = pneg %p106
        %p224 = pneg %p103
        %p225 = pneg %p132
        %p226 = pneg %p129
        %s227 = sand.u32 %s119, 1
        %s228 = scalar_lea.sflag [#allocation4], %s227
        %s229 = sand.u32 %s119, 1
        %s230 = smul.addr %s229, 256
        %s231 = scalar_lea.vmem [#allocation7], %s230
        %s232 = smul.u32 4, %s22
        %s233 = smul.u32 64, %s22
        %v235 = vld [vmem:[#allocation5] sm:$0xf]
        %v236 = vld [vmem:[#allocation5 + $0x4] sm:$0xf]
        %v237 = vld [vmem:[#allocation5 + $0x8] sm:$0xf]
        %v238 = vld [vmem:[#allocation5 + $0xc] sm:$0xf]
        %v239 = vld [vmem:[#allocation5 + $0x10] sm:$0xf]
        %v240 = vld [vmem:[#allocation5 + $0x14] sm:$0xf]
        %v241 = vld [vmem:[#allocation5 + $0x18] sm:$0xf]
        %v242 = vld [vmem:[#allocation5 + $0x1c] sm:$0xf]
        %s243 = scalar_lea.vmem [#allocation5], 32
        %v244 = vld [vmem:[%s243] sm:$0xf]
        %v245 = vld [vmem:[%s243 + $0x4] sm:$0xf]
        %v246 = vld [vmem:[%s243 + $0x8] sm:$0xf]
        %v247 = vld [vmem:[%s243 + $0xc] sm:$0xf]
        %v248 = vld [vmem:[%s243 + $0x10] sm:$0xf]
        %v249 = vld [vmem:[%s243 + $0x14] sm:$0xf]
        %v250 = vld [vmem:[%s243 + $0x18] sm:$0xf]
        %v251 = vld [vmem:[%s243 + $0x1c] sm:$0xf]
        %v252 = vld [vmem:[%s2] sm:$0x1]
        %v253 = vld [vmem:[%s3] sm:$0x1]
        %v254 = vld [vmem:[%s203] sm:$0xf]
        %v255 = vld [vmem:[%s203 + $0x4] sm:$0xf]
        %v256 = vld [vmem:[%s203 + $0x8] sm:$0xf]
        %v257 = vld [vmem:[%s203 + $0xc] sm:$0xf]
        %v258 = vld [vmem:[%s203 + $0x10] sm:$0xf]
        %v259 = vld [vmem:[%s203 + $0x14] sm:$0xf]
        %v260 = vld [vmem:[%s203 + $0x18] sm:$0xf]
        %v261 = vld [vmem:[%s203 + $0x1c] sm:$0xf]
        %v262 = vld [vmem:[%s203 + $0x20] sm:$0xf]
        %v263 = vld [vmem:[%s203 + $0x24] sm:$0xf]
        %v264 = vld [vmem:[%s203 + $0x28] sm:$0xf]
        %v265 = vld [vmem:[%s203 + $0x2c] sm:$0xf]
        %v266 = vld [vmem:[%s203 + $0x30] sm:$0xf]
        %v267 = vld [vmem:[%s203 + $0x34] sm:$0xf]
        %v268 = vld [vmem:[%s203 + $0x38] sm:$0xf]
        %v269 = vld [vmem:[%s203 + $0x3c] sm:$0xf]
        %s270 = scalar_lea.vmem %s203, 8 [#allocation2]
        %v271 = vld [vmem:[%s270] sm:$0xf]
        %v272 = vld [vmem:[%s270 + $0x4] sm:$0xf]
        %v273 = vld [vmem:[%s270 + $0x8] sm:$0xf]
        %v274 = vld [vmem:[%s270 + $0xc] sm:$0xf]
        %v275 = vld [vmem:[%s270 + $0x10] sm:$0xf]
        %v276 = vld [vmem:[%s270 + $0x14] sm:$0xf]
        %v277 = vld [vmem:[%s270 + $0x18] sm:$0xf]
        %v278 = vld [vmem:[%s270 + $0x1c] sm:$0xf]
        %v279 = vld [vmem:[%s270 + $0x20] sm:$0xf]
        %v280 = vld [vmem:[%s270 + $0x24] sm:$0xf]
        %v281 = vld [vmem:[%s270 + $0x28] sm:$0xf]
        %v282 = vld [vmem:[%s270 + $0x2c] sm:$0xf]
        %v283 = vld [vmem:[%s270 + $0x30] sm:$0xf]
        %v284 = vld [vmem:[%s270 + $0x34] sm:$0xf]
        %v285 = vld [vmem:[%s270 + $0x38] sm:$0xf]
        %v286 = vld [vmem:[%s270 + $0x3c] sm:$0xf]
        %v303 = vunpack.c.l.b16 %v271
        %v304 = vunpack.c.l.b16 %v272
        %v305 = vunpack.c.l.b16 %v273
        %v306 = vunpack.c.l.b16 %v274
        %v307 = vunpack.c.l.b16 %v275
        %v308 = vunpack.c.l.b16 %v276
        %v309 = vunpack.c.l.b16 %v277
        %v310 = vunpack.c.l.b16 %v278
        %v311 = vunpack.c.l.b16 %v279
        %v312 = vunpack.c.l.b16 %v280
        %v313 = vunpack.c.l.b16 %v281
        %v314 = vunpack.c.l.b16 %v282
        %v315 = vunpack.c.l.b16 %v283
        %v316 = vunpack.c.l.b16 %v284
        %v317 = vunpack.c.l.b16 %v285
        %v318 = vunpack.c.l.b16 %v286
        %v319 = vpack.c.b16 %v304, %v303
        %v320 = vpack.c.b16 %v306, %v305
        %v321 = vpack.c.b16 %v308, %v307
        %v322 = vpack.c.b16 %v310, %v309
        %v323 = vpack.c.b16 %v312, %v311
        %v324 = vpack.c.b16 %v314, %v313
        %v325 = vpack.c.b16 %v316, %v315
        %v326 = vpack.c.b16 %v318, %v317
        %v335 = vunpack.c.l.b16 %v244
        %v336 = vunpack.c.l.b16 %v245
        %v337 = vunpack.c.l.b16 %v246
        %v338 = vunpack.c.l.b16 %v247
        %v339 = vunpack.c.l.b16 %v248
        %v340 = vunpack.c.l.b16 %v249
        %v341 = vunpack.c.l.b16 %v250
        %v342 = vunpack.c.l.b16 %v251
        %v343 = vpack.c.b16 %v336, %v335
        %v344 = vpack.c.b16 %v338, %v337
        %v345 = vpack.c.b16 %v340, %v339
        %v346 = vpack.c.b16 %v342, %v341
        %vm351 = vcmask 523264
        %v353 = vsel %vm351, %v319, 0
        %v356 = vsel %vm351, %v320, 0
        %v359 = vsel %vm351, %v321, 0
        %v362 = vsel %vm351, %v322, 0
        %v365 = vsel %vm351, %v323, 0
        %v368 = vsel %vm351, %v324, 0
        %v371 = vsel %vm351, %v325, 0
        %v374 = vsel %vm351, %v326, 0
        %376 = vmatprep.subr.bf16.mxu0 0
        %377 = vmatpush1.bf16.msra.mxu0 0
        %378 = vmatprep.subr.bf16.mxu0 0
        %379 = vmatpush1.bf16.msra.mxu0 0
        %380 = vmatprep.subr.bf16.mxu0 0
        %381 = vmatpush1.bf16.msra.mxu0 0
        %382 = vmatprep.subr.bf16.mxu0 0
        %383 = vmatpush1.bf16.msra.mxu0 0
        %384 = vmatprep.subr.bf16.mxu0 0
        %385 = vmatpush1.bf16.msra.mxu0 %v346
        %386 = vmatprep.subr.bf16.mxu0 0
        %387 = vmatpush1.bf16.msra.mxu0 %v345
        %388 = vmatprep.subr.bf16.mxu0 0
        %389 = vmatpush1.bf16.msra.mxu0 %v344
        %390 = vmatprep.subr.bf16.mxu0 0
        %391 = vmatpush1.bf16.msra.mxu0 %v343
        %392 = vmatprep.subr.bf16.mxu0 0
        %393 = vmatpush2.bf16.msra.mxu0 0
        %394 = vmatprep.subr.bf16.mxu0 0
        %395 = vmatpush2.bf16.msra.mxu0 0
        %396 = vmatprep.subr.bf16.mxu0 0
        %397 = vmatpush2.bf16.msra.mxu0 0
        %398 = vmatprep.subr.bf16.mxu0 0
        %399 = vmatpush2.bf16.msra.mxu0 0
        %400 = vmatprep.subr.bf16.mxu0 0
        %401 = vmatpush2.bf16.msra.mxu0 0
        %402 = vmatprep.subr.bf16.mxu0 0
        %403 = vmatpush2.bf16.msra.mxu0 0
        %404 = vmatprep.subr.bf16.mxu0 0
        %405 = vmatpush2.bf16.msra.mxu0 0
        %406 = vmatprep.subr.bf16.mxu0 0
        %407 = vmatpush2.bf16.msra.mxu0 0
        %408 = vmatprep.mubr.bf16.mxu0 0
        %409 = vmatmul.mubr.bf16.gmra.mxu0 %v353
        %v410 = vpop.f32.mrf.mxu0
        %v411 = vadd.f32 0.0, %v410
        %v412 = vpop.f32.mrf.mxu0
        %v413 = vpop.f32.mrf.mxu0
        %v414 = vadd.f32 0.0, %v413
        %v415 = vpop.f32.mrf.mxu0
        %416 = vmatprep.mubr.bf16.mxu0 0
        %417 = vmatmul.mubr.bf16.gmra.mxu0 %v356
        %v418 = vpop.f32.mrf.mxu0
        %v419 = vadd.f32 0.0, %v418
        %v420 = vpop.f32.mrf.mxu0
        %v421 = vpop.f32.mrf.mxu0
        %v422 = vadd.f32 0.0, %v421
        %v423 = vpop.f32.mrf.mxu0
        %424 = vmatprep.mubr.bf16.mxu0 0
        %425 = vmatmul.mubr.bf16.gmra.mxu0 %v359
        %v426 = vpop.f32.mrf.mxu0
        %v427 = vadd.f32 0.0, %v426
        %v428 = vpop.f32.mrf.mxu0
        %v429 = vpop.f32.mrf.mxu0
        %v430 = vadd.f32 0.0, %v429
        %v431 = vpop.f32.mrf.mxu0
        %432 = vmatprep.mubr.bf16.mxu0 0
        %433 = vmatmul.mubr.bf16.gmra.mxu0 %v362
        %v434 = vpop.f32.mrf.mxu0
        %v435 = vadd.f32 0.0, %v434
        %v436 = vpop.f32.mrf.mxu0
        %v437 = vpop.f32.mrf.mxu0
        %v438 = vadd.f32 0.0, %v437
        %v439 = vpop.f32.mrf.mxu0
        %440 = vmatprep.mubr.bf16.mxu0 0
        %441 = vmatmul.mubr.bf16.gmra.mxu0 %v365
        %v442 = vpop.f32.mrf.mxu0
        %v443 = vadd.f32 0.0, %v442
        %v444 = vpop.f32.mrf.mxu0
        %v445 = vpop.f32.mrf.mxu0
        %v446 = vadd.f32 0.0, %v445
        %v447 = vpop.f32.mrf.mxu0
        %448 = vmatprep.mubr.bf16.mxu0 0
        %449 = vmatmul.mubr.bf16.gmra.mxu0 %v368
        %v450 = vpop.f32.mrf.mxu0
        %v451 = vadd.f32 0.0, %v450
        %v452 = vpop.f32.mrf.mxu0
        %v453 = vpop.f32.mrf.mxu0
        %v454 = vadd.f32 0.0, %v453
        %v455 = vpop.f32.mrf.mxu0
        %456 = vmatprep.mubr.bf16.mxu0 0
        %457 = vmatmul.mubr.bf16.gmra.mxu0 %v371
        %v458 = vpop.f32.mrf.mxu0
        %v459 = vadd.f32 0.0, %v458
        %v460 = vpop.f32.mrf.mxu0
        %v461 = vpop.f32.mrf.mxu0
        %v462 = vadd.f32 0.0, %v461
        %v463 = vpop.f32.mrf.mxu0
        %464 = vmatprep.mubr.bf16.mxu0 0
        %465 = vmatmul.mubr.bf16.gmra.mxu0 %v374
        %v466 = vpop.f32.mrf.mxu0
        %v467 = vadd.f32 0.0, %v466
        %v468 = vpop.f32.mrf.mxu0
        %v469 = vpop.f32.mrf.mxu0
        %v470 = vadd.f32 0.0, %v469
        %v471 = vpop.f32.mrf.mxu0
        %472 = vdwg.mxu0
        %v489 = vunpack.c.l.b16 %v254
        %v490 = vunpack.c.l.b16 %v255
        %v491 = vunpack.c.l.b16 %v256
        %v492 = vunpack.c.l.b16 %v257
        %v493 = vunpack.c.l.b16 %v258
        %v494 = vunpack.c.l.b16 %v259
        %v495 = vunpack.c.l.b16 %v260
        %v496 = vunpack.c.l.b16 %v261
        %v497 = vunpack.c.l.b16 %v262
        %v498 = vunpack.c.l.b16 %v263
        %v499 = vunpack.c.l.b16 %v264
        %v500 = vunpack.c.l.b16 %v265
        %v501 = vunpack.c.l.b16 %v266
        %v502 = vunpack.c.l.b16 %v267
        %v503 = vunpack.c.l.b16 %v268
        %v504 = vunpack.c.l.b16 %v269
        %v505 = vpack.c.b16 %v490, %v489
        %v506 = vpack.c.b16 %v492, %v491
        %v507 = vpack.c.b16 %v494, %v493
        %v508 = vpack.c.b16 %v496, %v495
        %v509 = vpack.c.b16 %v498, %v497
        %v510 = vpack.c.b16 %v500, %v499
        %v511 = vpack.c.b16 %v502, %v501
        %v512 = vpack.c.b16 %v504, %v503
        %v521 = vunpack.c.l.b16 %v235
        %v522 = vunpack.c.l.b16 %v236
        %v523 = vunpack.c.l.b16 %v237
        %v524 = vunpack.c.l.b16 %v238
        %v525 = vunpack.c.l.b16 %v239
        %v526 = vunpack.c.l.b16 %v240
        %v527 = vunpack.c.l.b16 %v241
        %v528 = vunpack.c.l.b16 %v242
        %v529 = vpack.c.b16 %v522, %v521
        %v530 = vpack.c.b16 %v524, %v523
        %v531 = vpack.c.b16 %v526, %v525
        %v532 = vpack.c.b16 %v528, %v527
        %v538 = vsel %vm351, %v505, 0
        %v541 = vsel %vm351, %v506, 0
        %v544 = vsel %vm351, %v507, 0
        %v547 = vsel %vm351, %v508, 0
        %v550 = vsel %vm351, %v509, 0
        %v553 = vsel %vm351, %v510, 0
        %v556 = vsel %vm351, %v511, 0
        %v559 = vsel %vm351, %v512, 0
        %561 = vmatprep.subr.bf16.mxu0 0
        %562 = vmatpush1.bf16.msra.mxu0 0
        %563 = vmatprep.subr.bf16.mxu0 0
        %564 = vmatpush1.bf16.msra.mxu0 0
        %565 = vmatprep.subr.bf16.mxu0 0
        %566 = vmatpush1.bf16.msra.mxu0 0
        %567 = vmatprep.subr.bf16.mxu0 0
        %568 = vmatpush1.bf16.msra.mxu0 0
        %569 = vmatprep.subr.bf16.mxu0 0
        %570 = vmatpush1.bf16.msra.mxu0 %v532
        %571 = vmatprep.subr.bf16.mxu0 0
        %572 = vmatpush1.bf16.msra.mxu0 %v531
        %573 = vmatprep.subr.bf16.mxu0 0
        %574 = vmatpush1.bf16.msra.mxu0 %v530
        %575 = vmatprep.subr.bf16.mxu0 0
        %576 = vmatpush1.bf16.msra.mxu0 %v529
        %577 = vmatprep.subr.bf16.mxu0 0
        %578 = vmatpush2.bf16.msra.mxu0 0
        %579 = vmatprep.subr.bf16.mxu0 0
        %580 = vmatpush2.bf16.msra.mxu0 0
        %581 = vmatprep.subr.bf16.mxu0 0
        %582 = vmatpush2.bf16.msra.mxu0 0
        %583 = vmatprep.subr.bf16.mxu0 0
        %584 = vmatpush2.bf16.msra.mxu0 0
        %585 = vmatprep.subr.bf16.mxu0 0
        %586 = vmatpush2.bf16.msra.mxu0 0
        %587 = vmatprep.subr.bf16.mxu0 0
        %588 = vmatpush2.bf16.msra.mxu0 0
        %589 = vmatprep.subr.bf16.mxu0 0
        %590 = vmatpush2.bf16.msra.mxu0 0
        %591 = vmatprep.subr.bf16.mxu0 0
        %592 = vmatpush2.bf16.msra.mxu0 0
        %593 = vmatprep.mubr.bf16.mxu0 0
        %594 = vmatmul.mubr.bf16.gmra.mxu0 %v538
        %v595 = vpop.f32.mrf.mxu0
        %v596 = vadd.f32 %v411, %v595
        %v597 = vpop.f32.mrf.mxu0
        %v598 = vpop.f32.mrf.mxu0
        %v599 = vadd.f32 %v414, %v598
        %v600 = vpop.f32.mrf.mxu0
        %601 = vmatprep.mubr.bf16.mxu0 0
        %602 = vmatmul.mubr.bf16.gmra.mxu0 %v541
        %v603 = vpop.f32.mrf.mxu0
        %v604 = vadd.f32 %v419, %v603
        %v605 = vpop.f32.mrf.mxu0
        %v606 = vpop.f32.mrf.mxu0
        %v607 = vadd.f32 %v422, %v606
        %v608 = vpop.f32.mrf.mxu0
        %609 = vmatprep.mubr.bf16.mxu0 0
        %610 = vmatmul.mubr.bf16.gmra.mxu0 %v544
        %v611 = vpop.f32.mrf.mxu0
        %v612 = vadd.f32 %v427, %v611
        %v613 = vpop.f32.mrf.mxu0
        %v614 = vpop.f32.mrf.mxu0
        %v615 = vadd.f32 %v430, %v614
        %v616 = vpop.f32.mrf.mxu0
        %617 = vmatprep.mubr.bf16.mxu0 0
        %618 = vmatmul.mubr.bf16.gmra.mxu0 %v547
        %v619 = vpop.f32.mrf.mxu0
        %v620 = vadd.f32 %v435, %v619
        %v621 = vpop.f32.mrf.mxu0
        %v622 = vpop.f32.mrf.mxu0
        %v623 = vadd.f32 %v438, %v622
        %v624 = vpop.f32.mrf.mxu0
        %625 = vmatprep.mubr.bf16.mxu0 0
        %626 = vmatmul.mubr.bf16.gmra.mxu0 %v550
        %v627 = vpop.f32.mrf.mxu0
        %v628 = vadd.f32 %v443, %v627
        %v629 = vpop.f32.mrf.mxu0
        %v630 = vpop.f32.mrf.mxu0
        %v631 = vadd.f32 %v446, %v630
        %v632 = vpop.f32.mrf.mxu0
        %633 = vmatprep.mubr.bf16.mxu0 0
        %634 = vmatmul.mubr.bf16.gmra.mxu0 %v553
        %v635 = vpop.f32.mrf.mxu0
        %v636 = vadd.f32 %v451, %v635
        %v637 = vpop.f32.mrf.mxu0
        %v638 = vpop.f32.mrf.mxu0
        %v639 = vadd.f32 %v454, %v638
        %v640 = vpop.f32.mrf.mxu0
        %641 = vmatprep.mubr.bf16.mxu0 0
        %642 = vmatmul.mubr.bf16.gmra.mxu0 %v556
        %v643 = vpop.f32.mrf.mxu0
        %v644 = vadd.f32 %v459, %v643
        %v645 = vpop.f32.mrf.mxu0
        %v646 = vpop.f32.mrf.mxu0
        %v647 = vadd.f32 %v462, %v646
        %v648 = vpop.f32.mrf.mxu0
        %649 = vmatprep.mubr.bf16.mxu0 0
        %650 = vmatmul.mubr.bf16.gmra.mxu0 %v559
        %v651 = vpop.f32.mrf.mxu0
        %v652 = vadd.f32 %v467, %v651
        %v653 = vpop.f32.mrf.mxu0
        %v654 = vpop.f32.mrf.mxu0
        %v655 = vadd.f32 %v470, %v654
        %v656 = vpop.f32.mrf.mxu0
        %657 = vdwg.mxu0
        %v659 = vlaneseq
        %v660 = vshrl.u32 %v659, 7
        %v661 = vsub.s32 0, %v660
        %v662 = vrot.slane %v252, %v661
        %v664 = vmul.f32 %v596, %v662
        %v665 = vmul.f32 %v599, %v662
        %v666 = vmul.f32 %v604, %v662
        %v667 = vmul.f32 %v607, %v662
        %v668 = vmul.f32 %v612, %v662
        %v669 = vmul.f32 %v615, %v662
        %v670 = vmul.f32 %v620, %v662
        %v671 = vmul.f32 %v623, %v662
        %v672 = vmul.f32 %v628, %v662
        %v673 = vmul.f32 %v631, %v662
        %v674 = vmul.f32 %v636, %v662
        %v675 = vmul.f32 %v639, %v662
        %v676 = vmul.f32 %v644, %v662
        %v677 = vmul.f32 %v647, %v662
        %v678 = vmul.f32 %v652, %v662
        %v679 = vmul.f32 %v655, %v662
        %v681 = vlaneseq
        %v682 = vshrl.u32 %v681, 7
        %v683 = vsub.s32 0, %v682
        %v684 = vrot.slane %v253, %v683
        %v686 = vadd.f32 %v664, %v684
        %v687 = vadd.f32 %v665, %v684
        %v688 = vadd.f32 %v666, %v684
        %v689 = vadd.f32 %v667, %v684
        %v690 = vadd.f32 %v668, %v684
        %v691 = vadd.f32 %v669, %v684
        %v692 = vadd.f32 %v670, %v684
        %v693 = vadd.f32 %v671, %v684
        %v694 = vadd.f32 %v672, %v684
        %v695 = vadd.f32 %v673, %v684
        %v696 = vadd.f32 %v674, %v684
        %v697 = vadd.f32 %v675, %v684
        %v698 = vadd.f32 %v676, %v684
        %v699 = vadd.f32 %v677, %v684
        %v700 = vadd.f32 %v678, %v684
        %v701 = vadd.f32 %v679, %v684
        %v702 = vpack.c.bf16 %v687, %v686
        %v703 = vpack.c.bf16 %v689, %v688
        %v704 = vpack.c.bf16 %v691, %v690
        %v705 = vpack.c.bf16 %v693, %v692
        %v706 = vpack.c.bf16 %v695, %v694
        %v707 = vpack.c.bf16 %v697, %v696
        %v708 = vpack.c.bf16 %v699, %v698
        %v709 = vpack.c.bf16 %v701, %v700
        %v718 = vunpack.c.l.b16 %v702
        %v719 = vunpack.c.h.b16 %v702
        %v720 = vunpack.c.l.b16 %v703
        %v721 = vunpack.c.h.b16 %v703
        %v722 = vunpack.c.l.b16 %v704
        %v723 = vunpack.c.h.b16 %v704
        %v724 = vunpack.c.l.b16 %v705
        %v725 = vunpack.c.h.b16 %v705
        %v726 = vunpack.c.l.b16 %v706
        %v727 = vunpack.c.h.b16 %v706
        %v728 = vunpack.c.l.b16 %v707
        %v729 = vunpack.c.h.b16 %v707
        %v730 = vunpack.c.l.b16 %v708
        %v731 = vunpack.c.h.b16 %v708
        %v732 = vunpack.c.l.b16 %v709
        %v733 = vunpack.c.h.b16 %v709
        %v734 = vpack.c.b16 %v718, %v718
        %v735 = vpack.c.b16 %v719, %v719
        %v736 = vpack.c.b16 %v720, %v720
        %v737 = vpack.c.b16 %v721, %v721
        %v738 = vpack.c.b16 %v722, %v722
        %v739 = vpack.c.b16 %v723, %v723
        %v740 = vpack.c.b16 %v724, %v724
        %v741 = vpack.c.b16 %v725, %v725
        %v742 = vpack.c.b16 %v726, %v726
        %v743 = vpack.c.b16 %v727, %v727
        %v744 = vpack.c.b16 %v728, %v728
        %v745 = vpack.c.b16 %v729, %v729
        %v746 = vpack.c.b16 %v730, %v730
        %v747 = vpack.c.b16 %v731, %v731
        %v748 = vpack.c.b16 %v732, %v732
        %v749 = vpack.c.b16 %v733, %v733
        %766 = vst [vmem:[%s231] sm:$0xf] %v734
        %767 = vst [vmem:[%s231 + $0x4] sm:$0xf] %v735
        %768 = vst [vmem:[%s231 + $0x8] sm:$0xf] %v736
        %769 = vst [vmem:[%s231 + $0xc] sm:$0xf] %v737
        %770 = vst [vmem:[%s231 + $0x10] sm:$0xf] %v738
        %771 = vst [vmem:[%s231 + $0x14] sm:$0xf] %v739
        %772 = vst [vmem:[%s231 + $0x18] sm:$0xf] %v740
        %773 = vst [vmem:[%s231 + $0x1c] sm:$0xf] %v741
        %774 = vst [vmem:[%s231 + $0x20] sm:$0xf] %v742
        %775 = vst [vmem:[%s231 + $0x24] sm:$0xf] %v743
        %776 = vst [vmem:[%s231 + $0x28] sm:$0xf] %v744
        %777 = vst [vmem:[%s231 + $0x2c] sm:$0xf] %v745
        %778 = vst [vmem:[%s231 + $0x30] sm:$0xf] %v746
        %779 = vst [vmem:[%s231 + $0x34] sm:$0xf] %v747
        %780 = vst [vmem:[%s231 + $0x38] sm:$0xf] %v748
        %781 = vst [vmem:[%s231 + $0x3c] sm:$0xf] %v749
        %s782 = scalar_lea.vmem %s203, 72 [#allocation2]
        %v783 = vld [vmem:[%s782] sm:$0xf]
        %v784 = vld [vmem:[%s782 + $0x4] sm:$0xf]
        %v785 = vld [vmem:[%s782 + $0x8] sm:$0xf]
        %v786 = vld [vmem:[%s782 + $0xc] sm:$0xf]
        %v787 = vld [vmem:[%s782 + $0x10] sm:$0xf]
        %v788 = vld [vmem:[%s782 + $0x14] sm:$0xf]
        %v789 = vld [vmem:[%s782 + $0x18] sm:$0xf]
        %v790 = vld [vmem:[%s782 + $0x1c] sm:$0xf]
        %v791 = vld [vmem:[%s782 + $0x20] sm:$0xf]
        %v792 = vld [vmem:[%s782 + $0x24] sm:$0xf]
        %v793 = vld [vmem:[%s782 + $0x28] sm:$0xf]
        %v794 = vld [vmem:[%s782 + $0x2c] sm:$0xf]
        %v795 = vld [vmem:[%s782 + $0x30] sm:$0xf]
        %v796 = vld [vmem:[%s782 + $0x34] sm:$0xf]
        %v797 = vld [vmem:[%s782 + $0x38] sm:$0xf]
        %v798 = vld [vmem:[%s782 + $0x3c] sm:$0xf]
        %s799 = scalar_lea.vmem %s203, 80 [#allocation2]
        %v800 = vld [vmem:[%s799] sm:$0xf]
        %v801 = vld [vmem:[%s799 + $0x4] sm:$0xf]
        %v802 = vld [vmem:[%s799 + $0x8] sm:$0xf]
        %v803 = vld [vmem:[%s799 + $0xc] sm:$0xf]
        %v804 = vld [vmem:[%s799 + $0x10] sm:$0xf]
        %v805 = vld [vmem:[%s799 + $0x14] sm:$0xf]
        %v806 = vld [vmem:[%s799 + $0x18] sm:$0xf]
        %v807 = vld [vmem:[%s799 + $0x1c] sm:$0xf]
        %v808 = vld [vmem:[%s799 + $0x20] sm:$0xf]
        %v809 = vld [vmem:[%s799 + $0x24] sm:$0xf]
        %v810 = vld [vmem:[%s799 + $0x28] sm:$0xf]
        %v811 = vld [vmem:[%s799 + $0x2c] sm:$0xf]
        %v812 = vld [vmem:[%s799 + $0x30] sm:$0xf]
        %v813 = vld [vmem:[%s799 + $0x34] sm:$0xf]
        %v814 = vld [vmem:[%s799 + $0x38] sm:$0xf]
        %v815 = vld [vmem:[%s799 + $0x3c] sm:$0xf]
        %v832 = vunpack.c.l.b16 %v800
        %v833 = vunpack.c.l.b16 %v801
        %v834 = vunpack.c.l.b16 %v802
        %v835 = vunpack.c.l.b16 %v803
        %v836 = vunpack.c.l.b16 %v804
        %v837 = vunpack.c.l.b16 %v805
        %v838 = vunpack.c.l.b16 %v806
        %v839 = vunpack.c.l.b16 %v807
        %v840 = vunpack.c.l.b16 %v808
        %v841 = vunpack.c.l.b16 %v809
        %v842 = vunpack.c.l.b16 %v810
        %v843 = vunpack.c.l.b16 %v811
        %v844 = vunpack.c.l.b16 %v812
        %v845 = vunpack.c.l.b16 %v813
        %v846 = vunpack.c.l.b16 %v814
        %v847 = vunpack.c.l.b16 %v815
        %v848 = vpack.c.b16 %v833, %v832
        %v849 = vpack.c.b16 %v835, %v834
        %v850 = vpack.c.b16 %v837, %v836
        %v851 = vpack.c.b16 %v839, %v838
        %v852 = vpack.c.b16 %v841, %v840
        %v853 = vpack.c.b16 %v843, %v842
        %v854 = vpack.c.b16 %v845, %v844
        %v855 = vpack.c.b16 %v847, %v846
        %v857 = vsel %vm351, %v848, 0
        %v860 = vsel %vm351, %v849, 0
        %v863 = vsel %vm351, %v850, 0
        %v866 = vsel %vm351, %v851, 0
        %v869 = vsel %vm351, %v852, 0
        %v872 = vsel %vm351, %v853, 0
        %v875 = vsel %vm351, %v854, 0
        %v878 = vsel %vm351, %v855, 0
        %880 = vmatprep.subr.bf16.mxu0 0
        %881 = vmatpush1.bf16.msra.mxu0 0
        %882 = vmatprep.subr.bf16.mxu0 0
        %883 = vmatpush1.bf16.msra.mxu0 0
        %884 = vmatprep.subr.bf16.mxu0 0
        %885 = vmatpush1.bf16.msra.mxu0 0
        %886 = vmatprep.subr.bf16.mxu0 0
        %887 = vmatpush1.bf16.msra.mxu0 0
        %888 = vmatprep.subr.bf16.mxu0 0
        %889 = vmatpush1.bf16.msra.mxu0 %v346
        %890 = vmatprep.subr.bf16.mxu0 0
        %891 = vmatpush1.bf16.msra.mxu0 %v345
        %892 = vmatprep.subr.bf16.mxu0 0
        %893 = vmatpush1.bf16.msra.mxu0 %v344
        %894 = vmatprep.subr.bf16.mxu0 0
        %895 = vmatpush1.bf16.msra.mxu0 %v343
        %896 = vmatprep.subr.bf16.mxu0 0
        %897 = vmatpush2.bf16.msra.mxu0 0
        %898 = vmatprep.subr.bf16.mxu0 0
        %899 = vmatpush2.bf16.msra.mxu0 0
        %900 = vmatprep.subr.bf16.mxu0 0
        %901 = vmatpush2.bf16.msra.mxu0 0
        %902 = vmatprep.subr.bf16.mxu0 0
        %903 = vmatpush2.bf16.msra.mxu0 0
        %904 = vmatprep.subr.bf16.mxu0 0
        %905 = vmatpush2.bf16.msra.mxu0 0
        %906 = vmatprep.subr.bf16.mxu0 0
        %907 = vmatpush2.bf16.msra.mxu0 0
        %908 = vmatprep.subr.bf16.mxu0 0
        %909 = vmatpush2.bf16.msra.mxu0 0
        %910 = vmatprep.subr.bf16.mxu0 0
        %911 = vmatpush2.bf16.msra.mxu0 0
        %912 = vmatprep.mubr.bf16.mxu0 0
        %913 = vmatmul.mubr.bf16.gmra.mxu0 %v857
        %v914 = vpop.f32.mrf.mxu0
        %v915 = vadd.f32 0.0, %v914
        %v916 = vpop.f32.mrf.mxu0
        %v917 = vpop.f32.mrf.mxu0
        %v918 = vadd.f32 0.0, %v917
        %v919 = vpop.f32.mrf.mxu0
        %920 = vmatprep.mubr.bf16.mxu0 0
        %921 = vmatmul.mubr.bf16.gmra.mxu0 %v860
        %v922 = vpop.f32.mrf.mxu0
        %v923 = vadd.f32 0.0, %v922
        %v924 = vpop.f32.mrf.mxu0
        %v925 = vpop.f32.mrf.mxu0
        %v926 = vadd.f32 0.0, %v925
        %v927 = vpop.f32.mrf.mxu0
        %928 = vmatprep.mubr.bf16.mxu0 0
        %929 = vmatmul.mubr.bf16.gmra.mxu0 %v863
        %v930 = vpop.f32.mrf.mxu0
        %v931 = vadd.f32 0.0, %v930
        %v932 = vpop.f32.mrf.mxu0
        %v933 = vpop.f32.mrf.mxu0
        %v934 = vadd.f32 0.0, %v933
        %v935 = vpop.f32.mrf.mxu0
        %936 = vmatprep.mubr.bf16.mxu0 0
        %937 = vmatmul.mubr.bf16.gmra.mxu0 %v866
        %v938 = vpop.f32.mrf.mxu0
        %v939 = vadd.f32 0.0, %v938
        %v940 = vpop.f32.mrf.mxu0
        %v941 = vpop.f32.mrf.mxu0
        %v942 = vadd.f32 0.0, %v941
        %v943 = vpop.f32.mrf.mxu0
        %944 = vmatprep.mubr.bf16.mxu0 0
        %945 = vmatmul.mubr.bf16.gmra.mxu0 %v869
        %v946 = vpop.f32.mrf.mxu0
        %v947 = vadd.f32 0.0, %v946
        %v948 = vpop.f32.mrf.mxu0
        %v949 = vpop.f32.mrf.mxu0
        %v950 = vadd.f32 0.0, %v949
        %v951 = vpop.f32.mrf.mxu0
        %952 = vmatprep.mubr.bf16.mxu0 0
        %953 = vmatmul.mubr.bf16.gmra.mxu0 %v872
        %v954 = vpop.f32.mrf.mxu0
        %v955 = vadd.f32 0.0, %v954
        %v956 = vpop.f32.mrf.mxu0
        %v957 = vpop.f32.mrf.mxu0
        %v958 = vadd.f32 0.0, %v957
        %v959 = vpop.f32.mrf.mxu0
        %960 = vmatprep.mubr.bf16.mxu0 0
        %961 = vmatmul.mubr.bf16.gmra.mxu0 %v875
        %v962 = vpop.f32.mrf.mxu0
        %v963 = vadd.f32 0.0, %v962
        %v964 = vpop.f32.mrf.mxu0
        %v965 = vpop.f32.mrf.mxu0
        %v966 = vadd.f32 0.0, %v965
        %v967 = vpop.f32.mrf.mxu0
        %968 = vmatprep.mubr.bf16.mxu0 0
        %969 = vmatmul.mubr.bf16.gmra.mxu0 %v878
        %v970 = vpop.f32.mrf.mxu0
        %v971 = vadd.f32 0.0, %v970
        %v972 = vpop.f32.mrf.mxu0
        %v973 = vpop.f32.mrf.mxu0
        %v974 = vadd.f32 0.0, %v973
        %v975 = vpop.f32.mrf.mxu0
        %976 = vdwg.mxu0
        %v993 = vunpack.c.l.b16 %v783
        %v994 = vunpack.c.l.b16 %v784
        %v995 = vunpack.c.l.b16 %v785
        %v996 = vunpack.c.l.b16 %v786
        %v997 = vunpack.c.l.b16 %v787
        %v998 = vunpack.c.l.b16 %v788
        %v999 = vunpack.c.l.b16 %v789
        %v1000 = vunpack.c.l.b16 %v790
        %v1001 = vunpack.c.l.b16 %v791
        %v1002 = vunpack.c.l.b16 %v792
        %v1003 = vunpack.c.l.b16 %v793
        %v1004 = vunpack.c.l.b16 %v794
        %v1005 = vunpack.c.l.b16 %v795
        %v1006 = vunpack.c.l.b16 %v796
        %v1007 = vunpack.c.l.b16 %v797
        %v1008 = vunpack.c.l.b16 %v798
        %v1009 = vpack.c.b16 %v994, %v993
        %v1010 = vpack.c.b16 %v996, %v995
        %v1011 = vpack.c.b16 %v998, %v997
        %v1012 = vpack.c.b16 %v1000, %v999
        %v1013 = vpack.c.b16 %v1002, %v1001
        %v1014 = vpack.c.b16 %v1004, %v1003
        %v1015 = vpack.c.b16 %v1006, %v1005
        %v1016 = vpack.c.b16 %v1008, %v1007
        %v1018 = vsel %vm351, %v1009, 0
        %v1021 = vsel %vm351, %v1010, 0
        %v1024 = vsel %vm351, %v1011, 0
        %v1027 = vsel %vm351, %v1012, 0
        %v1030 = vsel %vm351, %v1013, 0
        %v1033 = vsel %vm351, %v1014, 0
        %v1036 = vsel %vm351, %v1015, 0
        %v1039 = vsel %vm351, %v1016, 0
        %1041 = vmatprep.subr.bf16.mxu0 0
        %1042 = vmatpush1.bf16.msra.mxu0 0
        %1043 = vmatprep.subr.bf16.mxu0 0
        %1044 = vmatpush1.bf16.msra.mxu0 0
        %1045 = vmatprep.subr.bf16.mxu0 0
        %1046 = vmatpush1.bf16.msra.mxu0 0
        %1047 = vmatprep.subr.bf16.mxu0 0
        %1048 = vmatpush1.bf16.msra.mxu0 0
        %1049 = vmatprep.subr.bf16.mxu0 0
        %1050 = vmatpush1.bf16.msra.mxu0 %v532
        %1051 = vmatprep.subr.bf16.mxu0 0
        %1052 = vmatpush1.bf16.msra.mxu0 %v531
        %1053 = vmatprep.subr.bf16.mxu0 0
        %1054 = vmatpush1.bf16.msra.mxu0 %v530
        %1055 = vmatprep.subr.bf16.mxu0 0
        %1056 = vmatpush1.bf16.msra.mxu0 %v529
        %1057 = vmatprep.subr.bf16.mxu0 0
        %1058 = vmatpush2.bf16.msra.mxu0 0
        %1059 = vmatprep.subr.bf16.mxu0 0
        %1060 = vmatpush2.bf16.msra.mxu0 0
        %1061 = vmatprep.subr.bf16.mxu0 0
        %1062 = vmatpush2.bf16.msra.mxu0 0
        %1063 = vmatprep.subr.bf16.mxu0 0
        %1064 = vmatpush2.bf16.msra.mxu0 0
        %1065 = vmatprep.subr.bf16.mxu0 0
        %1066 = vmatpush2.bf16.msra.mxu0 0
        %1067 = vmatprep.subr.bf16.mxu0 0
        %1068 = vmatpush2.bf16.msra.mxu0 0
        %1069 = vmatprep.subr.bf16.mxu0 0
        %1070 = vmatpush2.bf16.msra.mxu0 0
        %1071 = vmatprep.subr.bf16.mxu0 0
        %1072 = vmatpush2.bf16.msra.mxu0 0
        %1073 = vmatprep.mubr.bf16.mxu0 0
        %1074 = vmatmul.mubr.bf16.gmra.mxu0 %v1018
        %v1075 = vpop.f32.mrf.mxu0
        %v1076 = vadd.f32 %v915, %v1075
        %v1077 = vpop.f32.mrf.mxu0
        %v1078 = vpop.f32.mrf.mxu0
        %v1079 = vadd.f32 %v918, %v1078
        %v1080 = vpop.f32.mrf.mxu0
        %1081 = vmatprep.mubr.bf16.mxu0 0
        %1082 = vmatmul.mubr.bf16.gmra.mxu0 %v1021
        %v1083 = vpop.f32.mrf.mxu0
        %v1084 = vadd.f32 %v923, %v1083
        %v1085 = vpop.f32.mrf.mxu0
        %v1086 = vpop.f32.mrf.mxu0
        %v1087 = vadd.f32 %v926, %v1086
        %v1088 = vpop.f32.mrf.mxu0
        %1089 = vmatprep.mubr.bf16.mxu0 0
        %1090 = vmatmul.mubr.bf16.gmra.mxu0 %v1024
        %v1091 = vpop.f32.mrf.mxu0
        %v1092 = vadd.f32 %v931, %v1091
        %v1093 = vpop.f32.mrf.mxu0
        %v1094 = vpop.f32.mrf.mxu0
        %v1095 = vadd.f32 %v934, %v1094
        %v1096 = vpop.f32.mrf.mxu0
        %1097 = vmatprep.mubr.bf16.mxu0 0
        %1098 = vmatmul.mubr.bf16.gmra.mxu0 %v1027
        %v1099 = vpop.f32.mrf.mxu0
        %v1100 = vadd.f32 %v939, %v1099
        %v1101 = vpop.f32.mrf.mxu0
        %v1102 = vpop.f32.mrf.mxu0
        %v1103 = vadd.f32 %v942, %v1102
        %v1104 = vpop.f32.mrf.mxu0
        %1105 = vmatprep.mubr.bf16.mxu0 0
        %1106 = vmatmul.mubr.bf16.gmra.mxu0 %v1030
        %v1107 = vpop.f32.mrf.mxu0
        %v1108 = vadd.f32 %v947, %v1107
        %v1109 = vpop.f32.mrf.mxu0
        %v1110 = vpop.f32.mrf.mxu0
        %v1111 = vadd.f32 %v950, %v1110
        %v1112 = vpop.f32.mrf.mxu0
        %1113 = vmatprep.mubr.bf16.mxu0 0
        %1114 = vmatmul.mubr.bf16.gmra.mxu0 %v1033
        %v1115 = vpop.f32.mrf.mxu0
        %v1116 = vadd.f32 %v955, %v1115
        %v1117 = vpop.f32.mrf.mxu0
        %v1118 = vpop.f32.mrf.mxu0
        %v1119 = vadd.f32 %v958, %v1118
        %v1120 = vpop.f32.mrf.mxu0
        %1121 = vmatprep.mubr.bf16.mxu0 0
        %1122 = vmatmul.mubr.bf16.gmra.mxu0 %v1036
        %v1123 = vpop.f32.mrf.mxu0
        %v1124 = vadd.f32 %v963, %v1123
        %v1125 = vpop.f32.mrf.mxu0
        %v1126 = vpop.f32.mrf.mxu0
        %v1127 = vadd.f32 %v966, %v1126
        %v1128 = vpop.f32.mrf.mxu0
        %1129 = vmatprep.mubr.bf16.mxu0 0
        %1130 = vmatmul.mubr.bf16.gmra.mxu0 %v1039
        %v1131 = vpop.f32.mrf.mxu0
        %v1132 = vadd.f32 %v971, %v1131
        %v1133 = vpop.f32.mrf.mxu0
        %v1134 = vpop.f32.mrf.mxu0
        %v1135 = vadd.f32 %v974, %v1134
        %v1136 = vpop.f32.mrf.mxu0
        %1137 = vdwg.mxu0
        %v1138 = vmul.f32 %v1076, %v662
        %v1139 = vmul.f32 %v1079, %v662
        %v1140 = vmul.f32 %v1084, %v662
        %v1141 = vmul.f32 %v1087, %v662
        %v1142 = vmul.f32 %v1092, %v662
        %v1143 = vmul.f32 %v1095, %v662
        %v1144 = vmul.f32 %v1100, %v662
        %v1145 = vmul.f32 %v1103, %v662
        %v1146 = vmul.f32 %v1108, %v662
        %v1147 = vmul.f32 %v1111, %v662
        %v1148 = vmul.f32 %v1116, %v662
        %v1149 = vmul.f32 %v1119, %v662
        %v1150 = vmul.f32 %v1124, %v662
        %v1151 = vmul.f32 %v1127, %v662
        %v1152 = vmul.f32 %v1132, %v662
        %v1153 = vmul.f32 %v1135, %v662
        %v1154 = vadd.f32 %v1138, %v684
        %v1155 = vadd.f32 %v1139, %v684
        %v1156 = vadd.f32 %v1140, %v684
        %v1157 = vadd.f32 %v1141, %v684
        %v1158 = vadd.f32 %v1142, %v684
        %v1159 = vadd.f32 %v1143, %v684
        %v1160 = vadd.f32 %v1144, %v684
        %v1161 = vadd.f32 %v1145, %v684
        %v1162 = vadd.f32 %v1146, %v684
        %v1163 = vadd.f32 %v1147, %v684
        %v1164 = vadd.f32 %v1148, %v684
        %v1165 = vadd.f32 %v1149, %v684
        %v1166 = vadd.f32 %v1150, %v684
        %v1167 = vadd.f32 %v1151, %v684
        %v1168 = vadd.f32 %v1152, %v684
        %v1169 = vadd.f32 %v1153, %v684
        %v1170 = vpack.c.bf16 %v1155, %v1154
        %v1171 = vpack.c.bf16 %v1157, %v1156
        %v1172 = vpack.c.bf16 %v1159, %v1158
        %v1173 = vpack.c.bf16 %v1161, %v1160
        %v1174 = vpack.c.bf16 %v1163, %v1162
        %v1175 = vpack.c.bf16 %v1165, %v1164
        %v1176 = vpack.c.bf16 %v1167, %v1166
        %v1177 = vpack.c.bf16 %v1169, %v1168
        %v1186 = vunpack.c.l.b16 %v1170
        %v1187 = vunpack.c.h.b16 %v1170
        %v1188 = vunpack.c.l.b16 %v1171
        %v1189 = vunpack.c.h.b16 %v1171
        %v1190 = vunpack.c.l.b16 %v1172
        %v1191 = vunpack.c.h.b16 %v1172
        %v1192 = vunpack.c.l.b16 %v1173
        %v1193 = vunpack.c.h.b16 %v1173
        %v1194 = vunpack.c.l.b16 %v1174
        %v1195 = vunpack.c.h.b16 %v1174
        %v1196 = vunpack.c.l.b16 %v1175
        %v1197 = vunpack.c.h.b16 %v1175
        %v1198 = vunpack.c.l.b16 %v1176
        %v1199 = vunpack.c.h.b16 %v1176
        %v1200 = vunpack.c.l.b16 %v1177
        %v1201 = vunpack.c.h.b16 %v1177
        %v1202 = vpack.c.b16 %v1186, %v1186
        %v1203 = vpack.c.b16 %v1187, %v1187
        %v1204 = vpack.c.b16 %v1188, %v1188
        %v1205 = vpack.c.b16 %v1189, %v1189
        %v1206 = vpack.c.b16 %v1190, %v1190
        %v1207 = vpack.c.b16 %v1191, %v1191
        %v1208 = vpack.c.b16 %v1192, %v1192
        %v1209 = vpack.c.b16 %v1193, %v1193
        %v1210 = vpack.c.b16 %v1194, %v1194
        %v1211 = vpack.c.b16 %v1195, %v1195
        %v1212 = vpack.c.b16 %v1196, %v1196
        %v1213 = vpack.c.b16 %v1197, %v1197
        %v1214 = vpack.c.b16 %v1198, %v1198
        %v1215 = vpack.c.b16 %v1199, %v1199
        %v1216 = vpack.c.b16 %v1200, %v1200
        %v1217 = vpack.c.b16 %v1201, %v1201
        %1234 = vst [vmem:[%s231 + $0x40] sm:$0xf] %v1202
        %1235 = vst [vmem:[%s231 + $0x44] sm:$0xf] %v1203
        %1236 = vst [vmem:[%s231 + $0x48] sm:$0xf] %v1204
        %1237 = vst [vmem:[%s231 + $0x4c] sm:$0xf] %v1205
        %1238 = vst [vmem:[%s231 + $0x50] sm:$0xf] %v1206
        %1239 = vst [vmem:[%s231 + $0x54] sm:$0xf] %v1207
        %1240 = vst [vmem:[%s231 + $0x58] sm:$0xf] %v1208
        %1241 = vst [vmem:[%s231 + $0x5c] sm:$0xf] %v1209
        %1242 = vst [vmem:[%s231 + $0x60] sm:$0xf] %v1210
        %1243 = vst [vmem:[%s231 + $0x64] sm:$0xf] %v1211
        %1244 = vst [vmem:[%s231 + $0x68] sm:$0xf] %v1212
        %1245 = vst [vmem:[%s231 + $0x6c] sm:$0xf] %v1213
        %1246 = vst [vmem:[%s231 + $0x70] sm:$0xf] %v1214
        %1247 = vst [vmem:[%s231 + $0x74] sm:$0xf] %v1215
        %1248 = vst [vmem:[%s231 + $0x78] sm:$0xf] %v1216
        %1249 = vst [vmem:[%s231 + $0x7c] sm:$0xf] %v1217
        %s1250 = scalar_lea.vmem %s203, 144 [#allocation2]
        %v1251 = vld [vmem:[%s1250] sm:$0xf]
        %v1252 = vld [vmem:[%s1250 + $0x4] sm:$0xf]
        %v1253 = vld [vmem:[%s1250 + $0x8] sm:$0xf]
        %v1254 = vld [vmem:[%s1250 + $0xc] sm:$0xf]
        %v1255 = vld [vmem:[%s1250 + $0x10] sm:$0xf]
        %v1256 = vld [vmem:[%s1250 + $0x14] sm:$0xf]
        %v1257 = vld [vmem:[%s1250 + $0x18] sm:$0xf]
        %v1258 = vld [vmem:[%s1250 + $0x1c] sm:$0xf]
        %v1259 = vld [vmem:[%s1250 + $0x20] sm:$0xf]
        %v1260 = vld [vmem:[%s1250 + $0x24] sm:$0xf]
        %v1261 = vld [vmem:[%s1250 + $0x28] sm:$0xf]
        %v1262 = vld [vmem:[%s1250 + $0x2c] sm:$0xf]
        %v1263 = vld [vmem:[%s1250 + $0x30] sm:$0xf]
        %v1264 = vld [vmem:[%s1250 + $0x34] sm:$0xf]
        %v1265 = vld [vmem:[%s1250 + $0x38] sm:$0xf]
        %v1266 = vld [vmem:[%s1250 + $0x3c] sm:$0xf]
        %s1267 = scalar_lea.vmem %s203, 152 [#allocation2]
        %v1268 = vld [vmem:[%s1267] sm:$0xf]
        %v1269 = vld [vmem:[%s1267 + $0x4] sm:$0xf]
        %v1270 = vld [vmem:[%s1267 + $0x8] sm:$0xf]
        %v1271 = vld [vmem:[%s1267 + $0xc] sm:$0xf]
        %v1272 = vld [vmem:[%s1267 + $0x10] sm:$0xf]
        %v1273 = vld [vmem:[%s1267 + $0x14] sm:$0xf]
        %v1274 = vld [vmem:[%s1267 + $0x18] sm:$0xf]
        %v1275 = vld [vmem:[%s1267 + $0x1c] sm:$0xf]
        %v1276 = vld [vmem:[%s1267 + $0x20] sm:$0xf]
        %v1277 = vld [vmem:[%s1267 + $0x24] sm:$0xf]
        %v1278 = vld [vmem:[%s1267 + $0x28] sm:$0xf]
        %v1279 = vld [vmem:[%s1267 + $0x2c] sm:$0xf]
        %v1280 = vld [vmem:[%s1267 + $0x30] sm:$0xf]
        %v1281 = vld [vmem:[%s1267 + $0x34] sm:$0xf]
        %v1282 = vld [vmem:[%s1267 + $0x38] sm:$0xf]
        %v1283 = vld [vmem:[%s1267 + $0x3c] sm:$0xf]
        %v1300 = vunpack.c.l.b16 %v1268
        %v1301 = vunpack.c.l.b16 %v1269
        %v1302 = vunpack.c.l.b16 %v1270
        %v1303 = vunpack.c.l.b16 %v1271
        %v1304 = vunpack.c.l.b16 %v1272
        %v1305 = vunpack.c.l.b16 %v1273
        %v1306 = vunpack.c.l.b16 %v1274
        %v1307 = vunpack.c.l.b16 %v1275
        %v1308 = vunpack.c.l.b16 %v1276
        %v1309 = vunpack.c.l.b16 %v1277
        %v1310 = vunpack.c.l.b16 %v1278
        %v1311 = vunpack.c.l.b16 %v1279
        %v1312 = vunpack.c.l.b16 %v1280
        %v1313 = vunpack.c.l.b16 %v1281
        %v1314 = vunpack.c.l.b16 %v1282
        %v1315 = vunpack.c.l.b16 %v1283
        %v1316 = vpack.c.b16 %v1301, %v1300
        %v1317 = vpack.c.b16 %v1303, %v1302
        %v1318 = vpack.c.b16 %v1305, %v1304
        %v1319 = vpack.c.b16 %v1307, %v1306
        %v1320 = vpack.c.b16 %v1309, %v1308
        %v1321 = vpack.c.b16 %v1311, %v1310
        %v1322 = vpack.c.b16 %v1313, %v1312
        %v1323 = vpack.c.b16 %v1315, %v1314
        %v1325 = vsel %vm351, %v1316, 0
        %v1328 = vsel %vm351, %v1317, 0
        %v1331 = vsel %vm351, %v1318, 0
        %v1334 = vsel %vm351, %v1319, 0
        %v1337 = vsel %vm351, %v1320, 0
        %v1340 = vsel %vm351, %v1321, 0
        %v1343 = vsel %vm351, %v1322, 0
        %v1346 = vsel %vm351, %v1323, 0
        %1348 = vmatprep.subr.bf16.mxu0 0
        %1349 = vmatpush1.bf16.msra.mxu0 0
        %1350 = vmatprep.subr.bf16.mxu0 0
        %1351 = vmatpush1.bf16.msra.mxu0 0
        %1352 = vmatprep.subr.bf16.mxu0 0
        %1353 = vmatpush1.bf16.msra.mxu0 0
        %1354 = vmatprep.subr.bf16.mxu0 0
        %1355 = vmatpush1.bf16.msra.mxu0 0
        %1356 = vmatprep.subr.bf16.mxu0 0
        %1357 = vmatpush1.bf16.msra.mxu0 %v346
        %1358 = vmatprep.subr.bf16.mxu0 0
        %1359 = vmatpush1.bf16.msra.mxu0 %v345
        %1360 = vmatprep.subr.bf16.mxu0 0
        %1361 = vmatpush1.bf16.msra.mxu0 %v344
        %1362 = vmatprep.subr.bf16.mxu0 0
        %1363 = vmatpush1.bf16.msra.mxu0 %v343
        %1364 = vmatprep.subr.bf16.mxu0 0
        %1365 = vmatpush2.bf16.msra.mxu0 0
        %1366 = vmatprep.subr.bf16.mxu0 0
        %1367 = vmatpush2.bf16.msra.mxu0 0
        %1368 = vmatprep.subr.bf16.mxu0 0
        %1369 = vmatpush2.bf16.msra.mxu0 0
        %1370 = vmatprep.subr.bf16.mxu0 0
        %1371 = vmatpush2.bf16.msra.mxu0 0
        %1372 = vmatprep.subr.bf16.mxu0 0
        %1373 = vmatpush2.bf16.msra.mxu0 0
        %1374 = vmatprep.subr.bf16.mxu0 0
        %1375 = vmatpush2.bf16.msra.mxu0 0
        %1376 = vmatprep.subr.bf16.mxu0 0
        %1377 = vmatpush2.bf16.msra.mxu0 0
        %1378 = vmatprep.subr.bf16.mxu0 0
        %1379 = vmatpush2.bf16.msra.mxu0 0
        %1380 = vmatprep.mubr.bf16.mxu0 0
        %1381 = vmatmul.mubr.bf16.gmra.mxu0 %v1325
        %v1382 = vpop.f32.mrf.mxu0
        %v1383 = vadd.f32 0.0, %v1382
        %v1384 = vpop.f32.mrf.mxu0
        %v1385 = vpop.f32.mrf.mxu0
        %v1386 = vadd.f32 0.0, %v1385
        %v1387 = vpop.f32.mrf.mxu0
        %1388 = vmatprep.mubr.bf16.mxu0 0
        %1389 = vmatmul.mubr.bf16.gmra.mxu0 %v1328
        %v1390 = vpop.f32.mrf.mxu0
        %v1391 = vadd.f32 0.0, %v1390
        %v1392 = vpop.f32.mrf.mxu0
        %v1393 = vpop.f32.mrf.mxu0
        %v1394 = vadd.f32 0.0, %v1393
        %v1395 = vpop.f32.mrf.mxu0
        %1396 = vmatprep.mubr.bf16.mxu0 0
        %1397 = vmatmul.mubr.bf16.gmra.mxu0 %v1331
        %v1398 = vpop.f32.mrf.mxu0
        %v1399 = vadd.f32 0.0, %v1398
        %v1400 = vpop.f32.mrf.mxu0
        %v1401 = vpop.f32.mrf.mxu0
        %v1402 = vadd.f32 0.0, %v1401
        %v1403 = vpop.f32.mrf.mxu0
        %1404 = vmatprep.mubr.bf16.mxu0 0
        %1405 = vmatmul.mubr.bf16.gmra.mxu0 %v1334
        %v1406 = vpop.f32.mrf.mxu0
        %v1407 = vadd.f32 0.0, %v1406
        %v1408 = vpop.f32.mrf.mxu0
        %v1409 = vpop.f32.mrf.mxu0
        %v1410 = vadd.f32 0.0, %v1409
        %v1411 = vpop.f32.mrf.mxu0
        %1412 = vmatprep.mubr.bf16.mxu0 0
        %1413 = vmatmul.mubr.bf16.gmra.mxu0 %v1337
        %v1414 = vpop.f32.mrf.mxu0
        %v1415 = vadd.f32 0.0, %v1414
        %v1416 = vpop.f32.mrf.mxu0
        %v1417 = vpop.f32.mrf.mxu0
        %v1418 = vadd.f32 0.0, %v1417
        %v1419 = vpop.f32.mrf.mxu0
        %1420 = vmatprep.mubr.bf16.mxu0 0
        %1421 = vmatmul.mubr.bf16.gmra.mxu0 %v1340
        %v1422 = vpop.f32.mrf.mxu0
        %v1423 = vadd.f32 0.0, %v1422
        %v1424 = vpop.f32.mrf.mxu0
        %v1425 = vpop.f32.mrf.mxu0
        %v1426 = vadd.f32 0.0, %v1425
        %v1427 = vpop.f32.mrf.mxu0
        %1428 = vmatprep.mubr.bf16.mxu0 0
        %1429 = vmatmul.mubr.bf16.gmra.mxu0 %v1343
        %v1430 = vpop.f32.mrf.mxu0
        %v1431 = vadd.f32 0.0, %v1430
        %v1432 = vpop.f32.mrf.mxu0
        %v1433 = vpop.f32.mrf.mxu0
        %v1434 = vadd.f32 0.0, %v1433
        %v1435 = vpop.f32.mrf.mxu0
        %1436 = vmatprep.mubr.bf16.mxu0 0
        %1437 = vmatmul.mubr.bf16.gmra.mxu0 %v1346
        %v1438 = vpop.f32.mrf.mxu0
        %v1439 = vadd.f32 0.0, %v1438
        %v1440 = vpop.f32.mrf.mxu0
        %v1441 = vpop.f32.mrf.mxu0
        %v1442 = vadd.f32 0.0, %v1441
        %v1443 = vpop.f32.mrf.mxu0
        %1444 = vdwg.mxu0
        %v1461 = vunpack.c.l.b16 %v1251
        %v1462 = vunpack.c.l.b16 %v1252
        %v1463 = vunpack.c.l.b16 %v1253
        %v1464 = vunpack.c.l.b16 %v1254
        %v1465 = vunpack.c.l.b16 %v1255
        %v1466 = vunpack.c.l.b16 %v1256
        %v1467 = vunpack.c.l.b16 %v1257
        %v1468 = vunpack.c.l.b16 %v1258
        %v1469 = vunpack.c.l.b16 %v1259
        %v1470 = vunpack.c.l.b16 %v1260
        %v1471 = vunpack.c.l.b16 %v1261
        %v1472 = vunpack.c.l.b16 %v1262
        %v1473 = vunpack.c.l.b16 %v1263
        %v1474 = vunpack.c.l.b16 %v1264
        %v1475 = vunpack.c.l.b16 %v1265
        %v1476 = vunpack.c.l.b16 %v1266
        %v1477 = vpack.c.b16 %v1462, %v1461
        %v1478 = vpack.c.b16 %v1464, %v1463
        %v1479 = vpack.c.b16 %v1466, %v1465
        %v1480 = vpack.c.b16 %v1468, %v1467
        %v1481 = vpack.c.b16 %v1470, %v1469
        %v1482 = vpack.c.b16 %v1472, %v1471
        %v1483 = vpack.c.b16 %v1474, %v1473
        %v1484 = vpack.c.b16 %v1476, %v1475
        %v1486 = vsel %vm351, %v1477, 0
        %v1489 = vsel %vm351, %v1478, 0
        %v1492 = vsel %vm351, %v1479, 0
        %v1495 = vsel %vm351, %v1480, 0
        %v1498 = vsel %vm351, %v1481, 0
        %v1501 = vsel %vm351, %v1482, 0
        %v1504 = vsel %vm351, %v1483, 0
        %v1507 = vsel %vm351, %v1484, 0
        %1509 = vmatprep.subr.bf16.mxu0 0
        %1510 = vmatpush1.bf16.msra.mxu0 0
        %1511 = vmatprep.subr.bf16.mxu0 0
        %1512 = vmatpush1.bf16.msra.mxu0 0
        %1513 = vmatprep.subr.bf16.mxu0 0
        %1514 = vmatpush1.bf16.msra.mxu0 0
        %1515 = vmatprep.subr.bf16.mxu0 0
        %1516 = vmatpush1.bf16.msra.mxu0 0
        %1517 = vmatprep.subr.bf16.mxu0 0
        %1518 = vmatpush1.bf16.msra.mxu0 %v532
        %1519 = vmatprep.subr.bf16.mxu0 0
        %1520 = vmatpush1.bf16.msra.mxu0 %v531
        %1521 = vmatprep.subr.bf16.mxu0 0
        %1522 = vmatpush1.bf16.msra.mxu0 %v530
        %1523 = vmatprep.subr.bf16.mxu0 0
        %1524 = vmatpush1.bf16.msra.mxu0 %v529
        %1525 = vmatprep.subr.bf16.mxu0 0
        %1526 = vmatpush2.bf16.msra.mxu0 0
        %1527 = vmatprep.subr.bf16.mxu0 0
        %1528 = vmatpush2.bf16.msra.mxu0 0
        %1529 = vmatprep.subr.bf16.mxu0 0
        %1530 = vmatpush2.bf16.msra.mxu0 0
        %1531 = vmatprep.subr.bf16.mxu0 0
        %1532 = vmatpush2.bf16.msra.mxu0 0
        %1533 = vmatprep.subr.bf16.mxu0 0
        %1534 = vmatpush2.bf16.msra.mxu0 0
        %1535 = vmatprep.subr.bf16.mxu0 0
        %1536 = vmatpush2.bf16.msra.mxu0 0
        %1537 = vmatprep.subr.bf16.mxu0 0
        %1538 = vmatpush2.bf16.msra.mxu0 0
        %1539 = vmatprep.subr.bf16.mxu0 0
        %1540 = vmatpush2.bf16.msra.mxu0 0
        %1541 = vmatprep.mubr.bf16.mxu0 0
        %1542 = vmatmul.mubr.bf16.gmra.mxu0 %v1486
        %v1543 = vpop.f32.mrf.mxu0
        %v1544 = vadd.f32 %v1383, %v1543
        %v1545 = vpop.f32.mrf.mxu0
        %v1546 = vpop.f32.mrf.mxu0
        %v1547 = vadd.f32 %v1386, %v1546
        %v1548 = vpop.f32.mrf.mxu0
        %1549 = vmatprep.mubr.bf16.mxu0 0
        %1550 = vmatmul.mubr.bf16.gmra.mxu0 %v1489
        %v1551 = vpop.f32.mrf.mxu0
        %v1552 = vadd.f32 %v1391, %v1551
        %v1553 = vpop.f32.mrf.mxu0
        %v1554 = vpop.f32.mrf.mxu0
        %v1555 = vadd.f32 %v1394, %v1554
        %v1556 = vpop.f32.mrf.mxu0
        %1557 = vmatprep.mubr.bf16.mxu0 0
        %1558 = vmatmul.mubr.bf16.gmra.mxu0 %v1492
        %v1559 = vpop.f32.mrf.mxu0
        %v1560 = vadd.f32 %v1399, %v1559
        %v1561 = vpop.f32.mrf.mxu0
        %v1562 = vpop.f32.mrf.mxu0
        %v1563 = vadd.f32 %v1402, %v1562
        %v1564 = vpop.f32.mrf.mxu0
        %1565 = vmatprep.mubr.bf16.mxu0 0
        %1566 = vmatmul.mubr.bf16.gmra.mxu0 %v1495
        %v1567 = vpop.f32.mrf.mxu0
        %v1568 = vadd.f32 %v1407, %v1567
        %v1569 = vpop.f32.mrf.mxu0
        %v1570 = vpop.f32.mrf.mxu0
        %v1571 = vadd.f32 %v1410, %v1570
        %v1572 = vpop.f32.mrf.mxu0
        %1573 = vmatprep.mubr.bf16.mxu0 0
        %1574 = vmatmul.mubr.bf16.gmra.mxu0 %v1498
        %v1575 = vpop.f32.mrf.mxu0
        %v1576 = vadd.f32 %v1415, %v1575
        %v1577 = vpop.f32.mrf.mxu0
        %v1578 = vpop.f32.mrf.mxu0
        %v1579 = vadd.f32 %v1418, %v1578
        %v1580 = vpop.f32.mrf.mxu0
        %1581 = vmatprep.mubr.bf16.mxu0 0
        %1582 = vmatmul.mubr.bf16.gmra.mxu0 %v1501
        %v1583 = vpop.f32.mrf.mxu0
        %v1584 = vadd.f32 %v1423, %v1583
        %v1585 = vpop.f32.mrf.mxu0
        %v1586 = vpop.f32.mrf.mxu0
        %v1587 = vadd.f32 %v1426, %v1586
        %v1588 = vpop.f32.mrf.mxu0
        %1589 = vmatprep.mubr.bf16.mxu0 0
        %1590 = vmatmul.mubr.bf16.gmra.mxu0 %v1504
        %v1591 = vpop.f32.mrf.mxu0
        %v1592 = vadd.f32 %v1431, %v1591
        %v1593 = vpop.f32.mrf.mxu0
        %v1594 = vpop.f32.mrf.mxu0
        %v1595 = vadd.f32 %v1434, %v1594
        %v1596 = vpop.f32.mrf.mxu0
        %1597 = vmatprep.mubr.bf16.mxu0 0
        %1598 = vmatmul.mubr.bf16.gmra.mxu0 %v1507
        %v1599 = vpop.f32.mrf.mxu0
        %v1600 = vadd.f32 %v1439, %v1599
        %v1601 = vpop.f32.mrf.mxu0
        %v1602 = vpop.f32.mrf.mxu0
        %v1603 = vadd.f32 %v1442, %v1602
        %v1604 = vpop.f32.mrf.mxu0
        %1605 = vdwg.mxu0
        %v1606 = vmul.f32 %v1544, %v662
        %v1607 = vmul.f32 %v1547, %v662
        %v1608 = vmul.f32 %v1552, %v662
        %v1609 = vmul.f32 %v1555, %v662
        %v1610 = vmul.f32 %v1560, %v662
        %v1611 = vmul.f32 %v1563, %v662
        %v1612 = vmul.f32 %v1568, %v662
        %v1613 = vmul.f32 %v1571, %v662
        %v1614 = vmul.f32 %v1576, %v662
        %v1615 = vmul.f32 %v1579, %v662
        %v1616 = vmul.f32 %v1584, %v662
        %v1617 = vmul.f32 %v1587, %v662
        %v1618 = vmul.f32 %v1592, %v662
        %v1619 = vmul.f32 %v1595, %v662
        %v1620 = vmul.f32 %v1600, %v662
        %v1621 = vmul.f32 %v1603, %v662
        %v1622 = vadd.f32 %v1606, %v684
        %v1623 = vadd.f32 %v1607, %v684
        %v1624 = vadd.f32 %v1608, %v684
        %v1625 = vadd.f32 %v1609, %v684
        %v1626 = vadd.f32 %v1610, %v684
        %v1627 = vadd.f32 %v1611, %v684
        %v1628 = vadd.f32 %v1612, %v684
        %v1629 = vadd.f32 %v1613, %v684
        %v1630 = vadd.f32 %v1614, %v684
        %v1631 = vadd.f32 %v1615, %v684
        %v1632 = vadd.f32 %v1616, %v684
        %v1633 = vadd.f32 %v1617, %v684
        %v1634 = vadd.f32 %v1618, %v684
        %v1635 = vadd.f32 %v1619, %v684
        %v1636 = vadd.f32 %v1620, %v684
        %v1637 = vadd.f32 %v1621, %v684
        %v1638 = vpack.c.bf16 %v1623, %v1622
        %v1639 = vpack.c.bf16 %v1625, %v1624
        %v1640 = vpack.c.bf16 %v1627, %v1626
        %v1641 = vpack.c.bf16 %v1629, %v1628
        %v1642 = vpack.c.bf16 %v1631, %v1630
        %v1643 = vpack.c.bf16 %v1633, %v1632
        %v1644 = vpack.c.bf16 %v1635, %v1634
        %v1645 = vpack.c.bf16 %v1637, %v1636
        %v1654 = vunpack.c.l.b16 %v1638
        %v1655 = vunpack.c.h.b16 %v1638
        %v1656 = vunpack.c.l.b16 %v1639
        %v1657 = vunpack.c.h.b16 %v1639
        %v1658 = vunpack.c.l.b16 %v1640
        %v1659 = vunpack.c.h.b16 %v1640
        %v1660 = vunpack.c.l.b16 %v1641
        %v1661 = vunpack.c.h.b16 %v1641
        %v1662 = vunpack.c.l.b16 %v1642
        %v1663 = vunpack.c.h.b16 %v1642
        %v1664 = vunpack.c.l.b16 %v1643
        %v1665 = vunpack.c.h.b16 %v1643
        %v1666 = vunpack.c.l.b16 %v1644
        %v1667 = vunpack.c.h.b16 %v1644
        %v1668 = vunpack.c.l.b16 %v1645
        %v1669 = vunpack.c.h.b16 %v1645
        %v1670 = vpack.c.b16 %v1654, %v1654
        %v1671 = vpack.c.b16 %v1655, %v1655
        %v1672 = vpack.c.b16 %v1656, %v1656
        %v1673 = vpack.c.b16 %v1657, %v1657
        %v1674 = vpack.c.b16 %v1658, %v1658
        %v1675 = vpack.c.b16 %v1659, %v1659
        %v1676 = vpack.c.b16 %v1660, %v1660
        %v1677 = vpack.c.b16 %v1661, %v1661
        %v1678 = vpack.c.b16 %v1662, %v1662
        %v1679 = vpack.c.b16 %v1663, %v1663
        %v1680 = vpack.c.b16 %v1664, %v1664
        %v1681 = vpack.c.b16 %v1665, %v1665
        %v1682 = vpack.c.b16 %v1666, %v1666
        %v1683 = vpack.c.b16 %v1667, %v1667
        %v1684 = vpack.c.b16 %v1668, %v1668
        %v1685 = vpack.c.b16 %v1669, %v1669
        %1702 = vst [vmem:[%s231 + $0x80] sm:$0xf] %v1670
        %1703 = vst [vmem:[%s231 + $0x84] sm:$0xf] %v1671
        %1704 = vst [vmem:[%s231 + $0x88] sm:$0xf] %v1672
        %1705 = vst [vmem:[%s231 + $0x8c] sm:$0xf] %v1673
        %1706 = vst [vmem:[%s231 + $0x90] sm:$0xf] %v1674
        %1707 = vst [vmem:[%s231 + $0x94] sm:$0xf] %v1675
        %1708 = vst [vmem:[%s231 + $0x98] sm:$0xf] %v1676
        %1709 = vst [vmem:[%s231 + $0x9c] sm:$0xf] %v1677
        %1710 = vst [vmem:[%s231 + $0xa0] sm:$0xf] %v1678
        %1711 = vst [vmem:[%s231 + $0xa4] sm:$0xf] %v1679
        %1712 = vst [vmem:[%s231 + $0xa8] sm:$0xf] %v1680
        %1713 = vst [vmem:[%s231 + $0xac] sm:$0xf] %v1681
        %1714 = vst [vmem:[%s231 + $0xb0] sm:$0xf] %v1682
        %1715 = vst [vmem:[%s231 + $0xb4] sm:$0xf] %v1683
        %1716 = vst [vmem:[%s231 + $0xb8] sm:$0xf] %v1684
        %1717 = vst [vmem:[%s231 + $0xbc] sm:$0xf] %v1685
        %s1718 = scalar_lea.vmem %s203, 216 [#allocation2]
        %v1719 = vld [vmem:[%s1718] sm:$0xf]
        %v1720 = vld [vmem:[%s1718 + $0x4] sm:$0xf]
        %v1721 = vld [vmem:[%s1718 + $0x8] sm:$0xf]
        %v1722 = vld [vmem:[%s1718 + $0xc] sm:$0xf]
        %v1723 = vld [vmem:[%s1718 + $0x10] sm:$0xf]
        %v1724 = vld [vmem:[%s1718 + $0x14] sm:$0xf]
        %v1725 = vld [vmem:[%s1718 + $0x18] sm:$0xf]
        %v1726 = vld [vmem:[%s1718 + $0x1c] sm:$0xf]
        %v1727 = vld [vmem:[%s1718 + $0x20] sm:$0xf]
        %v1728 = vld [vmem:[%s1718 + $0x24] sm:$0xf]
        %v1729 = vld [vmem:[%s1718 + $0x28] sm:$0xf]
        %v1730 = vld [vmem:[%s1718 + $0x2c] sm:$0xf]
        %v1731 = vld [vmem:[%s1718 + $0x30] sm:$0xf]
        %v1732 = vld [vmem:[%s1718 + $0x34] sm:$0xf]
        %v1733 = vld [vmem:[%s1718 + $0x38] sm:$0xf]
        %v1734 = vld [vmem:[%s1718 + $0x3c] sm:$0xf]
        %s1735 = scalar_lea.vmem %s203, 224 [#allocation2]
        %v1736 = vld [vmem:[%s1735] sm:$0xf]
        %v1737 = vld [vmem:[%s1735 + $0x4] sm:$0xf]
        %v1738 = vld [vmem:[%s1735 + $0x8] sm:$0xf]
        %v1739 = vld [vmem:[%s1735 + $0xc] sm:$0xf]
        %v1740 = vld [vmem:[%s1735 + $0x10] sm:$0xf]
        %v1741 = vld [vmem:[%s1735 + $0x14] sm:$0xf]
        %v1742 = vld [vmem:[%s1735 + $0x18] sm:$0xf]
        %v1743 = vld [vmem:[%s1735 + $0x1c] sm:$0xf]
        %v1744 = vld [vmem:[%s1735 + $0x20] sm:$0xf]
        %v1745 = vld [vmem:[%s1735 + $0x24] sm:$0xf]
        %v1746 = vld [vmem:[%s1735 + $0x28] sm:$0xf]
        %v1747 = vld [vmem:[%s1735 + $0x2c] sm:$0xf]
        %v1748 = vld [vmem:[%s1735 + $0x30] sm:$0xf]
        %v1749 = vld [vmem:[%s1735 + $0x34] sm:$0xf]
        %v1750 = vld [vmem:[%s1735 + $0x38] sm:$0xf]
        %v1751 = vld [vmem:[%s1735 + $0x3c] sm:$0xf]
        %v1768 = vunpack.c.l.b16 %v1736
        %v1769 = vunpack.c.l.b16 %v1737
        %v1770 = vunpack.c.l.b16 %v1738
        %v1771 = vunpack.c.l.b16 %v1739
        %v1772 = vunpack.c.l.b16 %v1740
        %v1773 = vunpack.c.l.b16 %v1741
        %v1774 = vunpack.c.l.b16 %v1742
        %v1775 = vunpack.c.l.b16 %v1743
        %v1776 = vunpack.c.l.b16 %v1744
        %v1777 = vunpack.c.l.b16 %v1745
        %v1778 = vunpack.c.l.b16 %v1746
        %v1779 = vunpack.c.l.b16 %v1747
        %v1780 = vunpack.c.l.b16 %v1748
        %v1781 = vunpack.c.l.b16 %v1749
        %v1782 = vunpack.c.l.b16 %v1750
        %v1783 = vunpack.c.l.b16 %v1751
        %v1784 = vpack.c.b16 %v1769, %v1768
        %v1785 = vpack.c.b16 %v1771, %v1770
        %v1786 = vpack.c.b16 %v1773, %v1772
        %v1787 = vpack.c.b16 %v1775, %v1774
        %v1788 = vpack.c.b16 %v1777, %v1776
        %v1789 = vpack.c.b16 %v1779, %v1778
        %v1790 = vpack.c.b16 %v1781, %v1780
        %v1791 = vpack.c.b16 %v1783, %v1782
        %v1793 = vsel %vm351, %v1784, 0
        %v1796 = vsel %vm351, %v1785, 0
        %v1799 = vsel %vm351, %v1786, 0
        %v1802 = vsel %vm351, %v1787, 0
        %v1805 = vsel %vm351, %v1788, 0
        %v1808 = vsel %vm351, %v1789, 0
        %v1811 = vsel %vm351, %v1790, 0
        %v1814 = vsel %vm351, %v1791, 0
        %1816 = vmatprep.subr.bf16.mxu0 0
        %1817 = vmatpush1.bf16.msra.mxu0 0
        %1818 = vmatprep.subr.bf16.mxu0 0
        %1819 = vmatpush1.bf16.msra.mxu0 0
        %1820 = vmatprep.subr.bf16.mxu0 0
        %1821 = vmatpush1.bf16.msra.mxu0 0
        %1822 = vmatprep.subr.bf16.mxu0 0
        %1823 = vmatpush1.bf16.msra.mxu0 0
        %1824 = vmatprep.subr.bf16.mxu0 0
        %1825 = vmatpush1.bf16.msra.mxu0 %v346
        %1826 = vmatprep.subr.bf16.mxu0 0
        %1827 = vmatpush1.bf16.msra.mxu0 %v345
        %1828 = vmatprep.subr.bf16.mxu0 0
        %1829 = vmatpush1.bf16.msra.mxu0 %v344
        %1830 = vmatprep.subr.bf16.mxu0 0
        %1831 = vmatpush1.bf16.msra.mxu0 %v343
        %1832 = vmatprep.subr.bf16.mxu0 0
        %1833 = vmatpush2.bf16.msra.mxu0 0
        %1834 = vmatprep.subr.bf16.mxu0 0
        %1835 = vmatpush2.bf16.msra.mxu0 0
        %1836 = vmatprep.subr.bf16.mxu0 0
        %1837 = vmatpush2.bf16.msra.mxu0 0
        %1838 = vmatprep.subr.bf16.mxu0 0
        %1839 = vmatpush2.bf16.msra.mxu0 0
        %1840 = vmatprep.subr.bf16.mxu0 0
        %1841 = vmatpush2.bf16.msra.mxu0 0
        %1842 = vmatprep.subr.bf16.mxu0 0
        %1843 = vmatpush2.bf16.msra.mxu0 0
        %1844 = vmatprep.subr.bf16.mxu0 0
        %1845 = vmatpush2.bf16.msra.mxu0 0
        %1846 = vmatprep.subr.bf16.mxu0 0
        %1847 = vmatpush2.bf16.msra.mxu0 0
        %1848 = vmatprep.mubr.bf16.mxu0 0
        %1849 = vmatmul.mubr.bf16.gmra.mxu0 %v1793
        %v1850 = vpop.f32.mrf.mxu0
        %v1851 = vadd.f32 0.0, %v1850
        %v1852 = vpop.f32.mrf.mxu0
        %v1853 = vpop.f32.mrf.mxu0
        %v1854 = vadd.f32 0.0, %v1853
        %v1855 = vpop.f32.mrf.mxu0
        %1856 = vmatprep.mubr.bf16.mxu0 0
        %1857 = vmatmul.mubr.bf16.gmra.mxu0 %v1796
        %v1858 = vpop.f32.mrf.mxu0
        %v1859 = vadd.f32 0.0, %v1858
        %v1860 = vpop.f32.mrf.mxu0
        %v1861 = vpop.f32.mrf.mxu0
        %v1862 = vadd.f32 0.0, %v1861
        %v1863 = vpop.f32.mrf.mxu0
        %1864 = vmatprep.mubr.bf16.mxu0 0
        %1865 = vmatmul.mubr.bf16.gmra.mxu0 %v1799
        %v1866 = vpop.f32.mrf.mxu0
        %v1867 = vadd.f32 0.0, %v1866
        %v1868 = vpop.f32.mrf.mxu0
        %v1869 = vpop.f32.mrf.mxu0
        %v1870 = vadd.f32 0.0, %v1869
        %v1871 = vpop.f32.mrf.mxu0
        %1872 = vmatprep.mubr.bf16.mxu0 0
        %1873 = vmatmul.mubr.bf16.gmra.mxu0 %v1802
        %v1874 = vpop.f32.mrf.mxu0
        %v1875 = vadd.f32 0.0, %v1874
        %v1876 = vpop.f32.mrf.mxu0
        %v1877 = vpop.f32.mrf.mxu0
        %v1878 = vadd.f32 0.0, %v1877
        %v1879 = vpop.f32.mrf.mxu0
        %1880 = vmatprep.mubr.bf16.mxu0 0
        %1881 = vmatmul.mubr.bf16.gmra.mxu0 %v1805
        %v1882 = vpop.f32.mrf.mxu0
        %v1883 = vadd.f32 0.0, %v1882
        %v1884 = vpop.f32.mrf.mxu0
        %v1885 = vpop.f32.mrf.mxu0
        %v1886 = vadd.f32 0.0, %v1885
        %v1887 = vpop.f32.mrf.mxu0
        %1888 = vmatprep.mubr.bf16.mxu0 0
        %1889 = vmatmul.mubr.bf16.gmra.mxu0 %v1808
        %v1890 = vpop.f32.mrf.mxu0
        %v1891 = vadd.f32 0.0, %v1890
        %v1892 = vpop.f32.mrf.mxu0
        %v1893 = vpop.f32.mrf.mxu0
        %v1894 = vadd.f32 0.0, %v1893
        %v1895 = vpop.f32.mrf.mxu0
        %1896 = vmatprep.mubr.bf16.mxu0 0
        %1897 = vmatmul.mubr.bf16.gmra.mxu0 %v1811
        %v1898 = vpop.f32.mrf.mxu0
        %v1899 = vadd.f32 0.0, %v1898
        %v1900 = vpop.f32.mrf.mxu0
        %v1901 = vpop.f32.mrf.mxu0
        %v1902 = vadd.f32 0.0, %v1901
        %v1903 = vpop.f32.mrf.mxu0
        %1904 = vmatprep.mubr.bf16.mxu0 0
        %1905 = vmatmul.mubr.bf16.gmra.mxu0 %v1814
        %v1906 = vpop.f32.mrf.mxu0
        %v1907 = vadd.f32 0.0, %v1906
        %v1908 = vpop.f32.mrf.mxu0
        %v1909 = vpop.f32.mrf.mxu0
        %v1910 = vadd.f32 0.0, %v1909
        %v1911 = vpop.f32.mrf.mxu0
        %1912 = vdwg.mxu0
        %v1929 = vunpack.c.l.b16 %v1719
        %v1930 = vunpack.c.l.b16 %v1720
        %v1931 = vunpack.c.l.b16 %v1721
        %v1932 = vunpack.c.l.b16 %v1722
        %v1933 = vunpack.c.l.b16 %v1723
        %v1934 = vunpack.c.l.b16 %v1724
        %v1935 = vunpack.c.l.b16 %v1725
        %v1936 = vunpack.c.l.b16 %v1726
        %v1937 = vunpack.c.l.b16 %v1727
        %v1938 = vunpack.c.l.b16 %v1728
        %v1939 = vunpack.c.l.b16 %v1729
        %v1940 = vunpack.c.l.b16 %v1730
        %v1941 = vunpack.c.l.b16 %v1731
        %v1942 = vunpack.c.l.b16 %v1732
        %v1943 = vunpack.c.l.b16 %v1733
        %v1944 = vunpack.c.l.b16 %v1734
        %v1945 = vpack.c.b16 %v1930, %v1929
        %v1946 = vpack.c.b16 %v1932, %v1931
        %v1947 = vpack.c.b16 %v1934, %v1933
        %v1948 = vpack.c.b16 %v1936, %v1935
        %v1949 = vpack.c.b16 %v1938, %v1937
        %v1950 = vpack.c.b16 %v1940, %v1939
        %v1951 = vpack.c.b16 %v1942, %v1941
        %v1952 = vpack.c.b16 %v1944, %v1943
        %v1954 = vsel %vm351, %v1945, 0
        %v1957 = vsel %vm351, %v1946, 0
        %v1960 = vsel %vm351, %v1947, 0
        %v1963 = vsel %vm351, %v1948, 0
        %v1966 = vsel %vm351, %v1949, 0
        %v1969 = vsel %vm351, %v1950, 0
        %v1972 = vsel %vm351, %v1951, 0
        %v1975 = vsel %vm351, %v1952, 0
        %1977 = vmatprep.subr.bf16.mxu0 0
        %1978 = vmatpush1.bf16.msra.mxu0 0
        %1979 = vmatprep.subr.bf16.mxu0 0
        %1980 = vmatpush1.bf16.msra.mxu0 0
        %1981 = vmatprep.subr.bf16.mxu0 0
        %1982 = vmatpush1.bf16.msra.mxu0 0
        %1983 = vmatprep.subr.bf16.mxu0 0
        %1984 = vmatpush1.bf16.msra.mxu0 0
        %1985 = vmatprep.subr.bf16.mxu0 0
        %1986 = vmatpush1.bf16.msra.mxu0 %v532
        %1987 = vmatprep.subr.bf16.mxu0 0
        %1988 = vmatpush1.bf16.msra.mxu0 %v531
        %1989 = vmatprep.subr.bf16.mxu0 0
        %1990 = vmatpush1.bf16.msra.mxu0 %v530
        %1991 = vmatprep.subr.bf16.mxu0 0
        %1992 = vmatpush1.bf16.msra.mxu0 %v529
        %1993 = vmatprep.subr.bf16.mxu0 0
        %1994 = vmatpush2.bf16.msra.mxu0 0
        %1995 = vmatprep.subr.bf16.mxu0 0
        %1996 = vmatpush2.bf16.msra.mxu0 0
        %1997 = vmatprep.subr.bf16.mxu0 0
        %1998 = vmatpush2.bf16.msra.mxu0 0
        %1999 = vmatprep.subr.bf16.mxu0 0
        %2000 = vmatpush2.bf16.msra.mxu0 0
        %2001 = vmatprep.subr.bf16.mxu0 0
        %2002 = vmatpush2.bf16.msra.mxu0 0
        %2003 = vmatprep.subr.bf16.mxu0 0
        %2004 = vmatpush2.bf16.msra.mxu0 0
        %2005 = vmatprep.subr.bf16.mxu0 0
        %2006 = vmatpush2.bf16.msra.mxu0 0
        %2007 = vmatprep.subr.bf16.mxu0 0
        %2008 = vmatpush2.bf16.msra.mxu0 0
        %2009 = vmatprep.mubr.bf16.mxu0 0
        %2010 = vmatmul.mubr.bf16.gmra.mxu0 %v1954
        %v2011 = vpop.f32.mrf.mxu0
        %v2012 = vadd.f32 %v1851, %v2011
        %v2013 = vpop.f32.mrf.mxu0
        %v2014 = vpop.f32.mrf.mxu0
        %v2015 = vadd.f32 %v1854, %v2014
        %v2016 = vpop.f32.mrf.mxu0
        %2017 = vmatprep.mubr.bf16.mxu0 0
        %2018 = vmatmul.mubr.bf16.gmra.mxu0 %v1957
        %v2019 = vpop.f32.mrf.mxu0
        %v2020 = vadd.f32 %v1859, %v2019
        %v2021 = vpop.f32.mrf.mxu0
        %v2022 = vpop.f32.mrf.mxu0
        %v2023 = vadd.f32 %v1862, %v2022
        %v2024 = vpop.f32.mrf.mxu0
        %2025 = vmatprep.mubr.bf16.mxu0 0
        %2026 = vmatmul.mubr.bf16.gmra.mxu0 %v1960
        %v2027 = vpop.f32.mrf.mxu0
        %v2028 = vadd.f32 %v1867, %v2027
        %v2029 = vpop.f32.mrf.mxu0
        %v2030 = vpop.f32.mrf.mxu0
        %v2031 = vadd.f32 %v1870, %v2030
        %v2032 = vpop.f32.mrf.mxu0
        %2033 = vmatprep.mubr.bf16.mxu0 0
        %2034 = vmatmul.mubr.bf16.gmra.mxu0 %v1963
        %v2035 = vpop.f32.mrf.mxu0
        %v2036 = vadd.f32 %v1875, %v2035
        %v2037 = vpop.f32.mrf.mxu0
        %v2038 = vpop.f32.mrf.mxu0
        %v2039 = vadd.f32 %v1878, %v2038
        %v2040 = vpop.f32.mrf.mxu0
        %2041 = vmatprep.mubr.bf16.mxu0 0
        %2042 = vmatmul.mubr.bf16.gmra.mxu0 %v1966
        %v2043 = vpop.f32.mrf.mxu0
        %v2044 = vadd.f32 %v1883, %v2043
        %v2045 = vpop.f32.mrf.mxu0
        %v2046 = vpop.f32.mrf.mxu0
        %v2047 = vadd.f32 %v1886, %v2046
        %v2048 = vpop.f32.mrf.mxu0
        %2049 = vmatprep.mubr.bf16.mxu0 0
        %2050 = vmatmul.mubr.bf16.gmra.mxu0 %v1969
        %v2051 = vpop.f32.mrf.mxu0
        %v2052 = vadd.f32 %v1891, %v2051
        %v2053 = vpop.f32.mrf.mxu0
        %v2054 = vpop.f32.mrf.mxu0
        %v2055 = vadd.f32 %v1894, %v2054
        %v2056 = vpop.f32.mrf.mxu0
        %2057 = vmatprep.mubr.bf16.mxu0 0
        %2058 = vmatmul.mubr.bf16.gmra.mxu0 %v1972
        %v2059 = vpop.f32.mrf.mxu0
        %v2060 = vadd.f32 %v1899, %v2059
        %v2061 = vpop.f32.mrf.mxu0
        %v2062 = vpop.f32.mrf.mxu0
        %v2063 = vadd.f32 %v1902, %v2062
        %v2064 = vpop.f32.mrf.mxu0
        %2065 = vmatprep.mubr.bf16.mxu0 0
        %2066 = vmatmul.mubr.bf16.gmra.mxu0 %v1975
        %v2067 = vpop.f32.mrf.mxu0
        %v2068 = vadd.f32 %v1907, %v2067
        %v2069 = vpop.f32.mrf.mxu0
        %v2070 = vpop.f32.mrf.mxu0
        %v2071 = vadd.f32 %v1910, %v2070
        %v2072 = vpop.f32.mrf.mxu0
        %2073 = vdwg.mxu0
        %v2074 = vmul.f32 %v2012, %v662
        %v2075 = vmul.f32 %v2015, %v662
        %v2076 = vmul.f32 %v2020, %v662
        %v2077 = vmul.f32 %v2023, %v662
        %v2078 = vmul.f32 %v2028, %v662
        %v2079 = vmul.f32 %v2031, %v662
        %v2080 = vmul.f32 %v2036, %v662
        %v2081 = vmul.f32 %v2039, %v662
        %v2082 = vmul.f32 %v2044, %v662
        %v2083 = vmul.f32 %v2047, %v662
        %v2084 = vmul.f32 %v2052, %v662
        %v2085 = vmul.f32 %v2055, %v662
        %v2086 = vmul.f32 %v2060, %v662
        %v2087 = vmul.f32 %v2063, %v662
        %v2088 = vmul.f32 %v2068, %v662
        %v2089 = vmul.f32 %v2071, %v662
        %v2090 = vadd.f32 %v2074, %v684
        %v2091 = vadd.f32 %v2075, %v684
        %v2092 = vadd.f32 %v2076, %v684
        %v2093 = vadd.f32 %v2077, %v684
        %v2094 = vadd.f32 %v2078, %v684
        %v2095 = vadd.f32 %v2079, %v684
        %v2096 = vadd.f32 %v2080, %v684
        %v2097 = vadd.f32 %v2081, %v684
        %v2098 = vadd.f32 %v2082, %v684
        %v2099 = vadd.f32 %v2083, %v684
        %v2100 = vadd.f32 %v2084, %v684
        %v2101 = vadd.f32 %v2085, %v684
        %v2102 = vadd.f32 %v2086, %v684
        %v2103 = vadd.f32 %v2087, %v684
        %v2104 = vadd.f32 %v2088, %v684
        %v2105 = vadd.f32 %v2089, %v684
        %v2106 = vpack.c.bf16 %v2091, %v2090
        %v2107 = vpack.c.bf16 %v2093, %v2092
        %v2108 = vpack.c.bf16 %v2095, %v2094
        %v2109 = vpack.c.bf16 %v2097, %v2096
        %v2110 = vpack.c.bf16 %v2099, %v2098
        %v2111 = vpack.c.bf16 %v2101, %v2100
        %v2112 = vpack.c.bf16 %v2103, %v2102
        %v2113 = vpack.c.bf16 %v2105, %v2104
        %v2122 = vunpack.c.l.b16 %v2106
        %v2123 = vunpack.c.h.b16 %v2106
        %v2124 = vunpack.c.l.b16 %v2107
        %v2125 = vunpack.c.h.b16 %v2107
        %v2126 = vunpack.c.l.b16 %v2108
        %v2127 = vunpack.c.h.b16 %v2108
        %v2128 = vunpack.c.l.b16 %v2109
        %v2129 = vunpack.c.h.b16 %v2109
        %v2130 = vunpack.c.l.b16 %v2110
        %v2131 = vunpack.c.h.b16 %v2110
        %v2132 = vunpack.c.l.b16 %v2111
        %v2133 = vunpack.c.h.b16 %v2111
        %v2134 = vunpack.c.l.b16 %v2112
        %v2135 = vunpack.c.h.b16 %v2112
        %v2136 = vunpack.c.l.b16 %v2113
        %v2137 = vunpack.c.h.b16 %v2113
        %v2138 = vpack.c.b16 %v2122, %v2122
        %v2139 = vpack.c.b16 %v2123, %v2123
        %v2140 = vpack.c.b16 %v2124, %v2124
        %v2141 = vpack.c.b16 %v2125, %v2125
        %v2142 = vpack.c.b16 %v2126, %v2126
        %v2143 = vpack.c.b16 %v2127, %v2127
        %v2144 = vpack.c.b16 %v2128, %v2128
        %v2145 = vpack.c.b16 %v2129, %v2129
        %v2146 = vpack.c.b16 %v2130, %v2130
        %v2147 = vpack.c.b16 %v2131, %v2131
        %v2148 = vpack.c.b16 %v2132, %v2132
        %v2149 = vpack.c.b16 %v2133, %v2133
        %v2150 = vpack.c.b16 %v2134, %v2134
        %v2151 = vpack.c.b16 %v2135, %v2135
        %v2152 = vpack.c.b16 %v2136, %v2136
        %v2153 = vpack.c.b16 %v2137, %v2137
        %2170 = vst [vmem:[%s231 + $0xc0] sm:$0xf] %v2138
        %2171 = vst [vmem:[%s231 + $0xc4] sm:$0xf] %v2139
        %2172 = vst [vmem:[%s231 + $0xc8] sm:$0xf] %v2140
        %2173 = vst [vmem:[%s231 + $0xcc] sm:$0xf] %v2141
        %2174 = vst [vmem:[%s231 + $0xd0] sm:$0xf] %v2142
        %2175 = vst [vmem:[%s231 + $0xd4] sm:$0xf] %v2143
        %2176 = vst [vmem:[%s231 + $0xd8] sm:$0xf] %v2144
        %2177 = vst [vmem:[%s231 + $0xdc] sm:$0xf] %v2145
        %2178 = vst [vmem:[%s231 + $0xe0] sm:$0xf] %v2146
        %2179 = vst [vmem:[%s231 + $0xe4] sm:$0xf] %v2147
        %2180 = vst [vmem:[%s231 + $0xe8] sm:$0xf] %v2148
        %2181 = vst [vmem:[%s231 + $0xec] sm:$0xf] %v2149
        %2182 = vst [vmem:[%s231 + $0xf0] sm:$0xf] %v2150
        %2183 = vst [vmem:[%s231 + $0xf4] sm:$0xf] %v2151
        %2184 = vst [vmem:[%s231 + $0xf8] sm:$0xf] %v2152
        %2185 = vst [vmem:[%s231 + $0xfc] sm:$0xf] %v2153
        %s2186 = sand.u32 %s119, 1
        %s2187 = scalar_lea.sflag [#allocation4], %s2186
        %s2188 = sand.u32 %s119, 1
        %s2189 = smul.addr %s2188, 256
        %s2190 = scalar_lea.vmem [#allocation7], %s2189
        // Predicated region
        $region45: #{tpu_custom_call.1} parent=35 // pred_check
          %p2191 = pneg %p129
        $region46: #{tpu_custom_call.1} parent=35 // pred_check_branch
          %2193 = sbr.rel (%p2191) target = $region48
        $region47: #{tpu_custom_call.1} parent=35 // pred_region
          %s2194 = smul.u32 64, %s22
          %s2196 = ssub.s32 4096, 4096
          %2197 = vsyncadd %s2187, %s2196
          %s2198 = smul.addr %s2194, 64
          %s2199 = scalar_lea.hbm %s4, %s2198
          %s2200 = sshll.u32 %s2190, 4
          %s2201 = int_to_ptr.vmem [resolvable:$true] %s2200
          %2206 = dma.vmem_to_hbm [thread:$0]  %s2201, 4096, %s2199, %s2187, 64, 64, 4
        $region48: #{tpu_custom_call.1} parent=35 // pred_fallthru
          _
      $region36: #{tpu_custom_call.1} parent=5 // pred_fallthru
        _
      %p2207 = scmp.le.s32.totalorder 2, %s17
      // Predicated region
      $region49: #{tpu_custom_call.1} parent=5 // pred_check
        %p2208 = pneg %p2207
      $region50: #{tpu_custom_call.1} parent=5 // pred_check_branch
        %2210 = sbr.rel (%p2208) target = $region52
      $region51: #{tpu_custom_call.1} parent=5 // pred_region
        %s2211 = ssub.s32 %s17, 2
        // Predicated region
        $region53: #{tpu_custom_call.1} parent=51 // pred_check
          %p2212 = pneg %p135
        $region54: #{tpu_custom_call.1} parent=51 // pred_check_branch
          %2214 = sbr.rel (%p2212) target = $region56
        $region55: #{tpu_custom_call.1} parent=51 // pred_region
          %s2215 = sand.u32 %s120, 1
          %s2216 = scalar_lea.sflag [#allocation4], %s2215
          %s2217 = sand.u32 %s120, 1
          %s2218 = smul.addr %s2217, 256
          %s2219 = scalar_lea.vmem [#allocation7], %s2218
          %2220 = dma.done %s2216, 4096
        $region56: #{tpu_custom_call.1} parent=51 // pred_fallthru
          _
      $region52: #{tpu_custom_call.1} parent=5 // pred_fallthru
        _
    $region6: #{tpu_custom_call.1} parent=1 // loop_footer
      %s21 = sadd.s32 1, %s17
    $region7: #{tpu_custom_call.1} parent=1 // loop_footer_branch
      %16 = sbr.rel target = $region3
    $region8: #{tpu_custom_call.1} parent=1 // loop_exit
      _
    %2221 = vsyncpa [#allocation3], 1
    %s2222 = scalar_lea.sflag [#allocation3], 1
    %2223 = vsyncpa %s2222, 1
    %2224 = vsyncpa [#allocation6], 1
    %2225 = vsyncpa [#allocation4], 1
    %s2226 = scalar_lea.sflag [#allocation4], 1
    %2227 = vsyncpa %s2226, 1

</llo_original>
